<compile_context>
chip_gen: v7x
topology: tpu7x:2x2x1
jax: 0.10.0
libtpu: 0.0.40
codegen_flags: <defaults>
</compile_context>

<pallas_src>
import functools

import numpy as np
import jax
import jax.numpy as jnp
from jax.experimental import pallas as pl
from jax.experimental.pallas import tpu as pltpu


def _gaussian_kernel_1d(kernel_size: int, sigma: float) -> np.ndarray:
    """Same construction as SSIMLoss._create_gaussian_kernel (1-D factor).

    The reference 2-D kernel is outer(k1d, k1d), hence exactly separable, and
    k1d is symmetric (k1d[a] == k1d[K-1-a]) by construction.
    """
    start = (1 - kernel_size) / 2
    end = (1 + kernel_size) / 2
    k1d = np.arange(start, end, step=1, dtype=np.float32)
    k1d = np.exp(-np.power(k1d / sigma, 2) / 2).astype(np.float32)
    k1d = k1d / k1d.sum()
    return k1d


def _choose_plane_batch(nc: int, h: int, w: int, kernel_size: int) -> int:
    """How many (n, c) planes to pack into one grid step."""
    p = kernel_size // 2
    hp, wp = h + 2 * p, w + 2 * p
    budget = 24 * 1024 * 1024  # per-step VMEM budget, safe on v5e/v6e/v7x

    def fits(b):
        # 2 packed scratch planes + 5 padded product/base maps + vertical-pass
        # and horizontal-pass temporaries + double-buffered in/out blocks (f32).
        per_step = 4 * (10 * hp * b * wp + 10 * h * b * wp + 6 * b * h * w)
        return per_step <= budget

    best = 1
    for b in range(1, nc + 1):
        if nc % b:
            continue
        if nc >= 2 and nc // b < 2:
            continue  # keep >= 2 grid steps so both v7x TensorCores get work
        if b > 32:
            continue  # bound the unrolled pack/unpack code size
        if not fits(b):
            continue
        best = b
    return best


def _make_ssim_kernel(B: int, H: int, W: int, kernel_size: int, k1d: np.ndarray):
    """Pallas kernel: SSIM map for B packed planes per grid step."""
    K = kernel_size
    p = K // 2
    Hp, Wp = H + 2 * p, W + 2 * p
    BWp = B * Wp
    Wt = BWp - 2 * p  # packed width after the horizontal pass
    taps = [float(v) for v in k1d]
    symmetric = all(
        abs(taps[a] - taps[K - 1 - a]) <= 1e-12 for a in range(K // 2))
    C1 = 0.01 ** 2
    C2 = 0.03 ** 2

    def conv1d(slices):
        """Symmetric-tap 1-D conv given the K shifted views of the input."""
        if symmetric:
            acc = taps[K // 2] * slices[K // 2] if (K % 2 == 1) else None
            for a in range(K // 2):
                term = taps[a] * (slices[a] + slices[K - 1 - a])
                acc = term if acc is None else acc + term
            return acc
        acc = taps[0] * slices[0]
        for a in range(1, K):
            acc = acc + taps[a] * slices[a]
        return acc

    def vconv(v):  # (Hp, BWp) -> (H, BWp): sublane-only shifts (cheap)
        return conv1d([v[a:a + H, :] for a in range(K)])

    def hconv(v):  # (H, BWp) -> (H, Wt): lane shifts, only H rows deep
        return conv1d([v[:, b:b + Wt] for b in range(K)])

    def blur(v):   # full separable gaussian on a packed padded map
        return hconv(vconv(v))

    def kernel(x_ref, y_ref, o_ref, xpk_ref, ypk_ref):
        # Zero the packed scratch, then drop each plane into its own Wp-wide
        # lane slot at offset (p, q*Wp + p). The zero borders/gaps are exactly
        # the conv zero-padding (2*p zeros between adjacent planes, so windows
        # never leak across planes). NOTE: this relies on ZERO padding —
        # products of zero-padded x, y == zero-padded products, which matches
        # F.conv2d(x*x, ...) etc. in the PyTorch reference.
        xpk_ref[...] = jnp.zeros_like(xpk_ref)
        ypk_ref[...] = jnp.zeros_like(ypk_ref)
        for q in range(B):
            c0 = q * Wp + p
            xpk_ref[p:p + H, c0:c0 + W] = x_ref[q]
            ypk_ref[p:p + H, c0:c0 + W] = y_ref[q]

        xp = xpk_ref[...]
        yp = ypk_ref[...]

        # TODO(synk): for large planes (H, W >= 256) route the separable conv
        # through the idle MXU via banded (H, Hp)/(Wp, W) weight matrices and
        # add halo tiling over H so the working set fits v7x's 64 MiB VMEM;
        # a lane-dense packed HBM output layout would also remove the masked
        # partial stores for W < 128.
        ux = blur(xp)
        uy = blur(yp)
        uxx = blur(xp * xp)
        uyy = blur(yp * yp)
        uxy = blur(xp * yp)

        sq_ux = ux * ux
        sq_uy = uy * uy
        vx = uxx - sq_ux
        vy = uyy - sq_uy
        vxy = uxy - ux * uy

        num = (2.0 * ux * uy + C1) * (2.0 * vxy + C2)
        den = (sq_ux + sq_uy + C1) * (vx + vy + C2)
        # The + 1e-12 matches the PyTorch reference; divide goes to the EUP.
        ssim = num * pl.reciprocal(den + 1e-12, approx=False)

        # Unpack: the first W columns of each Wp-wide slot are the valid map.
        for q in range(B):
            o_ref[q] = ssim[:, q * Wp:q * Wp + W]

    return kernel


@functools.partial(jax.jit, static_argnames=("kernel_size", "sigma"))
def ssim_map_pallas(x, y, kernel_size: int = 11, sigma: float = 1.5):
    """Returns the SSIM index map, shape (N, C, H, W), float32."""
    assert x.shape == y.shape and x.ndim == 4
    N, C, H, W = x.shape
    NC = N * C
    p = kernel_size // 2
    Hp, Wp = H + 2 * p, W + 2 * p

    # No HBM padding pass — planes go to the kernel unpadded.
    x2 = x.reshape(NC, H, W).astype(jnp.float32)
    y2 = y.reshape(NC, H, W).astype(jnp.float32)

    k1d = _gaussian_kernel_1d(kernel_size, sigma)
    B = _choose_plane_batch(NC, H, W, kernel_size)
    grid = NC // B

    kernel = _make_ssim_kernel(B, H, W, kernel_size, k1d)

    out = pl.pallas_call(
        kernel,
        out_shape=jax.ShapeDtypeStruct((NC, H, W), jnp.float32),
        grid=(grid,),
        in_specs=[
            pl.BlockSpec((B, H, W), lambda i: (i, 0, 0)),
            pl.BlockSpec((B, H, W), lambda i: (i, 0, 0)),
        ],
        out_specs=pl.BlockSpec((B, H, W), lambda i: (i, 0, 0)),
        scratch_shapes=[
            pltpu.VMEM((Hp, B * Wp), jnp.float32),  # packed padded x planes
            pltpu.VMEM((Hp, B * Wp), jnp.float32),  # packed padded y planes
        ],
        compiler_params=pltpu.CompilerParams(
            dimension_semantics=("parallel",),
            vmem_limit_bytes=48 * 1024 * 1024,
        ),
    )(x2, y2)
    return out.reshape(N, C, H, W)


def ssim_loss(x, y, as_loss: bool = True, kernel_size: int = 11, sigma: float = 1.5):
    """Equivalent of SSIMLoss.forward."""
    ssim_map = ssim_map_pallas(x, y, kernel_size=kernel_size, sigma=sigma)
    if as_loss:
        return 1.0 - jnp.mean(ssim_map)
    return ssim_map


def _ssim_reference_np(x, y, kernel_size=11, sigma=1.5):
    """Direct numpy port of SSIMLoss._ssim (121-tap conv) for validation."""
    x = np.asarray(x, np.float32)
    y = np.asarray(y, np.float32)
    k1 = _gaussian_kernel_1d(kernel_size, sigma)
    k2 = np.outer(k1, k1).astype(np.float32)
    p = kernel_size // 2
    N, C, H, W = x.shape

    def conv(img):
        ip = np.pad(img, ((0, 0), (0, 0), (p, p), (p, p)))
        out = np.zeros((N, C, H, W), np.float32)
        for a in range(kernel_size):
            for b in range(kernel_size):
                out += k2[a, b] * ip[:, :, a:a + H, b:b + W]
        return out

    ux, uy = conv(x), conv(y)
    uxx, uyy, uxy = conv(x * x), conv(y * y), conv(x * y)
    vx = uxx - ux * ux
    vy = uyy - uy * uy
    vxy = uxy - ux * uy
    c1, c2 = 0.01 ** 2, 0.03 ** 2
    num = (2 * ux * uy + c1) * (2 * vxy + c2)
    den = (ux ** 2 + uy ** 2 + c1) * (vx + vy + c2)
    return num / (den + 1e-12)


if __name__ == "__main__":
    key = jax.random.PRNGKey(0)
    kx, ky = jax.random.split(key)
    # SSIMLoss defaults: channel=3, kernel_size=11, sigma=1.5
    N, C, H, W = 2, 3, 16, 16
    x = jax.random.uniform(kx, (N, C, H, W), dtype=jnp.float32)
    y = jax.random.uniform(ky, (N, C, H, W), dtype=jnp.float32)

    ssim_map = ssim_loss(x, y, as_loss=False)
    jax.block_until_ready(ssim_map)
    loss = ssim_loss(x, y, as_loss=True)
    jax.block_until_ready(loss)

    assert ssim_map.shape == (N, C, H, W)
    assert loss.shape == ()

    # Sanity check against a direct (non-separable) numpy reference.
    ref = _ssim_reference_np(np.asarray(x), np.asarray(y))
    np.testing.assert_allclose(np.asarray(ssim_map), ref, rtol=1e-2, atol=1e-3)

    print("KERNEL_OK")
</pallas_src>

<mosaic_0001>
module attributes {stable_mosaic.version = 11 : i64} {
  func.func @kernel(%arg0: i32, %arg1: memref<3x16x16xf32, #tpu.memory_space<vmem>>, %arg2: memref<3x16x16xf32, #tpu.memory_space<vmem>>, %arg3: memref<3x16x16xf32, #tpu.memory_space<vmem>>, %arg4: memref<26x78xf32, #tpu.memory_space<vmem>>, %arg5: memref<26x78xf32, #tpu.memory_space<vmem>>) attributes {dimension_semantics = [#tpu.dimension_semantics<parallel>], iteration_bounds = array<i64: 2>, scalar_prefetch = 0 : i64, scratch_operands = 2 : i64, tpu.core_type = #tpu.core_type<tc>, window_params = [{transform_indices = @transform_0, window_bounds = array<i64: 3, 16, 16>}, {transform_indices = @transform_1, window_bounds = array<i64: 3, 16, 16>}, {transform_indices = @transform_2, window_bounds = array<i64: 3, 16, 16>}]} {
    %cst = arith.constant 0.000000e+00 : f32
    %0 = vector.broadcast %cst : f32 to vector<26x78xf32>
    %c0 = arith.constant 0 : index
    %c0_0 = arith.constant 0 : index
    %1 = vector.load %arg4[%c0, %c0_0] : memref<26x78xf32, #tpu.memory_space<vmem>>, vector<26x78xf32>
    tpu.vector_store %arg4[%c0, %c0_0], %0 {strides = array<i32>} : memref<26x78xf32, #tpu.memory_space<vmem>>, vector<26x78xf32>,
    %cst_1 = arith.constant 0.000000e+00 : f32
    %2 = vector.broadcast %cst_1 : f32 to vector<26x78xf32>
    %c0_2 = arith.constant 0 : index
    %c0_3 = arith.constant 0 : index
    %3 = vector.load %arg5[%c0_2, %c0_3] : memref<26x78xf32, #tpu.memory_space<vmem>>, vector<26x78xf32>
    tpu.vector_store %arg5[%c0_2, %c0_3], %2 {strides = array<i32>} : memref<26x78xf32, #tpu.memory_space<vmem>>, vector<26x78xf32>,
    %c0_4 = arith.constant 0 : index
    %c0_5 = arith.constant 0 : index
    %c0_6 = arith.constant 0 : index
    %4 = vector.load %arg1[%c0_4, %c0_5, %c0_6] : memref<3x16x16xf32, #tpu.memory_space<vmem>>, vector<1x16x16xf32>
    %5 = vector.shape_cast %4 : vector<1x16x16xf32> to vector<16x16xf32>
    %c5 = arith.constant 5 : index
    %c5_7 = arith.constant 5 : index
    %6 = vector.load %arg4[%c5, %c5_7] : memref<26x78xf32, #tpu.memory_space<vmem>>, vector<16x16xf32>
    tpu.vector_store %arg4[%c5, %c5_7], %5 {strides = array<i32>} : memref<26x78xf32, #tpu.memory_space<vmem>>, vector<16x16xf32>,
    %c0_8 = arith.constant 0 : index
    %c0_9 = arith.constant 0 : index
    %c0_10 = arith.constant 0 : index
    %7 = vector.load %arg2[%c0_8, %c0_9, %c0_10] : memref<3x16x16xf32, #tpu.memory_space<vmem>>, vector<1x16x16xf32>
    %8 = vector.shape_cast %7 : vector<1x16x16xf32> to vector<16x16xf32>
    %c5_11 = arith.constant 5 : index
    %c5_12 = arith.constant 5 : index
    %9 = vector.load %arg5[%c5_11, %c5_12] : memref<26x78xf32, #tpu.memory_space<vmem>>, vector<16x16xf32>
    tpu.vector_store %arg5[%c5_11, %c5_12], %8 {strides = array<i32>} : memref<26x78xf32, #tpu.memory_space<vmem>>, vector<16x16xf32>,
    %c1 = arith.constant 1 : index
    %c0_13 = arith.constant 0 : index
    %c0_14 = arith.constant 0 : index
    %10 = vector.load %arg1[%c1, %c0_13, %c0_14] : memref<3x16x16xf32, #tpu.memory_space<vmem>>, vector<1x16x16xf32>
    %11 = vector.shape_cast %10 : vector<1x16x16xf32> to vector<16x16xf32>
    %c5_15 = arith.constant 5 : index
    %c31 = arith.constant 31 : index
    %12 = vector.load %arg4[%c5_15, %c31] : memref<26x78xf32, #tpu.memory_space<vmem>>, vector<16x16xf32>
    tpu.vector_store %arg4[%c5_15, %c31], %11 {strides = array<i32>} : memref<26x78xf32, #tpu.memory_space<vmem>>, vector<16x16xf32>,
    %c1_16 = arith.constant 1 : index
    %c0_17 = arith.constant 0 : index
    %c0_18 = arith.constant 0 : index
    %13 = vector.load %arg2[%c1_16, %c0_17, %c0_18] : memref<3x16x16xf32, #tpu.memory_space<vmem>>, vector<1x16x16xf32>
    %14 = vector.shape_cast %13 : vector<1x16x16xf32> to vector<16x16xf32>
    %c5_19 = arith.constant 5 : index
    %c31_20 = arith.constant 31 : index
    %15 = vector.load %arg5[%c5_19, %c31_20] : memref<26x78xf32, #tpu.memory_space<vmem>>, vector<16x16xf32>
    tpu.vector_store %arg5[%c5_19, %c31_20], %14 {strides = array<i32>} : memref<26x78xf32, #tpu.memory_space<vmem>>, vector<16x16xf32>,
    %c2 = arith.constant 2 : index
    %c0_21 = arith.constant 0 : index
    %c0_22 = arith.constant 0 : index
    %16 = vector.load %arg1[%c2, %c0_21, %c0_22] : memref<3x16x16xf32, #tpu.memory_space<vmem>>, vector<1x16x16xf32>
    %17 = vector.shape_cast %16 : vector<1x16x16xf32> to vector<16x16xf32>
    %c5_23 = arith.constant 5 : index
    %c57 = arith.constant 57 : index
    %18 = vector.load %arg4[%c5_23, %c57] : memref<26x78xf32, #tpu.memory_space<vmem>>, vector<16x16xf32>
    tpu.vector_store %arg4[%c5_23, %c57], %17 {strides = array<i32>} : memref<26x78xf32, #tpu.memory_space<vmem>>, vector<16x16xf32>,
    %c2_24 = arith.constant 2 : index
    %c0_25 = arith.constant 0 : index
    %c0_26 = arith.constant 0 : index
    %19 = vector.load %arg2[%c2_24, %c0_25, %c0_26] : memref<3x16x16xf32, #tpu.memory_space<vmem>>, vector<1x16x16xf32>
    %20 = vector.shape_cast %19 : vector<1x16x16xf32> to vector<16x16xf32>
    %c5_27 = arith.constant 5 : index
    %c57_28 = arith.constant 57 : index
    %21 = vector.load %arg5[%c5_27, %c57_28] : memref<26x78xf32, #tpu.memory_space<vmem>>, vector<16x16xf32>
    tpu.vector_store %arg5[%c5_27, %c57_28], %20 {strides = array<i32>} : memref<26x78xf32, #tpu.memory_space<vmem>>, vector<16x16xf32>,
    %c0_29 = arith.constant 0 : index
    %c0_30 = arith.constant 0 : index
    %22 = vector.load %arg4[%c0_29, %c0_30] : memref<26x78xf32, #tpu.memory_space<vmem>>, vector<26x78xf32>
    %c0_31 = arith.constant 0 : index
    %c0_32 = arith.constant 0 : index
    %23 = vector.load %arg5[%c0_31, %c0_32] : memref<26x78xf32, #tpu.memory_space<vmem>>, vector<26x78xf32>
    %24 = vector.extract_strided_slice %22 {offsets = [0, 0], sizes = [16, 78], strides = [1, 1]} : vector<26x78xf32> to vector<16x78xf32>
    %25 = vector.extract_strided_slice %22 {offsets = [1, 0], sizes = [16, 78], strides = [1, 1]} : vector<26x78xf32> to vector<16x78xf32>
    %26 = vector.extract_strided_slice %22 {offsets = [2, 0], sizes = [16, 78], strides = [1, 1]} : vector<26x78xf32> to vector<16x78xf32>
    %27 = vector.extract_strided_slice %22 {offsets = [3, 0], sizes = [16, 78], strides = [1, 1]} : vector<26x78xf32> to vector<16x78xf32>
    %28 = vector.extract_strided_slice %22 {offsets = [4, 0], sizes = [16, 78], strides = [1, 1]} : vector<26x78xf32> to vector<16x78xf32>
    %29 = vector.extract_strided_slice %22 {offsets = [5, 0], sizes = [16, 78], strides = [1, 1]} : vector<26x78xf32> to vector<16x78xf32>
    %30 = vector.extract_strided_slice %22 {offsets = [6, 0], sizes = [16, 78], strides = [1, 1]} : vector<26x78xf32> to vector<16x78xf32>
    %31 = vector.extract_strided_slice %22 {offsets = [7, 0], sizes = [16, 78], strides = [1, 1]} : vector<26x78xf32> to vector<16x78xf32>
    %32 = vector.extract_strided_slice %22 {offsets = [8, 0], sizes = [16, 78], strides = [1, 1]} : vector<26x78xf32> to vector<16x78xf32>
    %33 = vector.extract_strided_slice %22 {offsets = [9, 0], sizes = [16, 78], strides = [1, 1]} : vector<26x78xf32> to vector<16x78xf32>
    %34 = vector.extract_strided_slice %22 {offsets = [10, 0], sizes = [16, 78], strides = [1, 1]} : vector<26x78xf32> to vector<16x78xf32>
    %cst_33 = arith.constant 0.266011745 : f32
    %35 = vector.broadcast %cst_33 : f32 to vector<16x78xf32>
    %36 = arith.mulf %35, %29 : vector<16x78xf32>
    %37 = arith.addf %24, %34 : vector<16x78xf32>
    %cst_34 = arith.constant 0.00102838036 : f32
    %38 = vector.broadcast %cst_34 : f32 to vector<16x78xf32>
    %39 = arith.mulf %38, %37 : vector<16x78xf32>
    %40 = arith.addf %36, %39 : vector<16x78xf32>
    %41 = arith.addf %25, %33 : vector<16x78xf32>
    %cst_35 = arith.constant 0.00759875635 : f32
    %42 = vector.broadcast %cst_35 : f32 to vector<16x78xf32>
    %43 = arith.mulf %42, %41 : vector<16x78xf32>
    %44 = arith.addf %40, %43 : vector<16x78xf32>
    %45 = arith.addf %26, %32 : vector<16x78xf32>
    %cst_36 = arith.constant 0.0360007733 : f32
    %46 = vector.broadcast %cst_36 : f32 to vector<16x78xf32>
    %47 = arith.mulf %46, %45 : vector<16x78xf32>
    %48 = arith.addf %44, %47 : vector<16x78xf32>
    %49 = arith.addf %27, %31 : vector<16x78xf32>
    %cst_37 = arith.constant 0.109360687 : f32
    %50 = vector.broadcast %cst_37 : f32 to vector<16x78xf32>
    %51 = arith.mulf %50, %49 : vector<16x78xf32>
    %52 = arith.addf %48, %51 : vector<16x78xf32>
    %53 = arith.addf %28, %30 : vector<16x78xf32>
    %cst_38 = arith.constant 0.213005543 : f32
    %54 = vector.broadcast %cst_38 : f32 to vector<16x78xf32>
    %55 = arith.mulf %54, %53 : vector<16x78xf32>
    %56 = arith.addf %52, %55 : vector<16x78xf32>
    %57 = vector.extract_strided_slice %56 {offsets = [0, 0], sizes = [16, 68], strides = [1, 1]} : vector<16x78xf32> to vector<16x68xf32>
    %58 = vector.extract_strided_slice %56 {offsets = [0, 1], sizes = [16, 68], strides = [1, 1]} : vector<16x78xf32> to vector<16x68xf32>
    %59 = vector.extract_strided_slice %56 {offsets = [0, 2], sizes = [16, 68], strides = [1, 1]} : vector<16x78xf32> to vector<16x68xf32>
    %60 = vector.extract_strided_slice %56 {offsets = [0, 3], sizes = [16, 68], strides = [1, 1]} : vector<16x78xf32> to vector<16x68xf32>
    %61 = vector.extract_strided_slice %56 {offsets = [0, 4], sizes = [16, 68], strides = [1, 1]} : vector<16x78xf32> to vector<16x68xf32>
    %62 = vector.extract_strided_slice %56 {offsets = [0, 5], sizes = [16, 68], strides = [1, 1]} : vector<16x78xf32> to vector<16x68xf32>
    %63 = vector.extract_strided_slice %56 {offsets = [0, 6], sizes = [16, 68], strides = [1, 1]} : vector<16x78xf32> to vector<16x68xf32>
    %64 = vector.extract_strided_slice %56 {offsets = [0, 7], sizes = [16, 68], strides = [1, 1]} : vector<16x78xf32> to vector<16x68xf32>
    %65 = vector.extract_strided_slice %56 {offsets = [0, 8], sizes = [16, 68], strides = [1, 1]} : vector<16x78xf32> to vector<16x68xf32>
    %66 = vector.extract_strided_slice %56 {offsets = [0, 9], sizes = [16, 68], strides = [1, 1]} : vector<16x78xf32> to vector<16x68xf32>
    %67 = vector.extract_strided_slice %56 {offsets = [0, 10], sizes = [16, 68], strides = [1, 1]} : vector<16x78xf32> to vector<16x68xf32>
    %cst_39 = arith.constant 0.266011745 : f32
    %68 = vector.broadcast %cst_39 : f32 to vector<16x68xf32>
    %69 = arith.mulf %68, %62 : vector<16x68xf32>
    %70 = arith.addf %57, %67 : vector<16x68xf32>
    %cst_40 = arith.constant 0.00102838036 : f32
    %71 = vector.broadcast %cst_40 : f32 to vector<16x68xf32>
    %72 = arith.mulf %71, %70 : vector<16x68xf32>
    %73 = arith.addf %69, %72 : vector<16x68xf32>
    %74 = arith.addf %58, %66 : vector<16x68xf32>
    %cst_41 = arith.constant 0.00759875635 : f32
    %75 = vector.broadcast %cst_41 : f32 to vector<16x68xf32>
    %76 = arith.mulf %75, %74 : vector<16x68xf32>
    %77 = arith.addf %73, %76 : vector<16x68xf32>
    %78 = arith.addf %59, %65 : vector<16x68xf32>
    %cst_42 = arith.constant 0.0360007733 : f32
    %79 = vector.broadcast %cst_42 : f32 to vector<16x68xf32>
    %80 = arith.mulf %79, %78 : vector<16x68xf32>
    %81 = arith.addf %77, %80 : vector<16x68xf32>
    %82 = arith.addf %60, %64 : vector<16x68xf32>
    %cst_43 = arith.constant 0.109360687 : f32
    %83 = vector.broadcast %cst_43 : f32 to vector<16x68xf32>
    %84 = arith.mulf %83, %82 : vector<16x68xf32>
    %85 = arith.addf %81, %84 : vector<16x68xf32>
    %86 = arith.addf %61, %63 : vector<16x68xf32>
    %cst_44 = arith.constant 0.213005543 : f32
    %87 = vector.broadcast %cst_44 : f32 to vector<16x68xf32>
    %88 = arith.mulf %87, %86 : vector<16x68xf32>
    %89 = arith.addf %85, %88 : vector<16x68xf32>
    %90 = vector.extract_strided_slice %23 {offsets = [0, 0], sizes = [16, 78], strides = [1, 1]} : vector<26x78xf32> to vector<16x78xf32>
    %91 = vector.extract_strided_slice %23 {offsets = [1, 0], sizes = [16, 78], strides = [1, 1]} : vector<26x78xf32> to vector<16x78xf32>
    %92 = vector.extract_strided_slice %23 {offsets = [2, 0], sizes = [16, 78], strides = [1, 1]} : vector<26x78xf32> to vector<16x78xf32>
    %93 = vector.extract_strided_slice %23 {offsets = [3, 0], sizes = [16, 78], strides = [1, 1]} : vector<26x78xf32> to vector<16x78xf32>
    %94 = vector.extract_strided_slice %23 {offsets = [4, 0], sizes = [16, 78], strides = [1, 1]} : vector<26x78xf32> to vector<16x78xf32>
    %95 = vector.extract_strided_slice %23 {offsets = [5, 0], sizes = [16, 78], strides = [1, 1]} : vector<26x78xf32> to vector<16x78xf32>
    %96 = vector.extract_strided_slice %23 {offsets = [6, 0], sizes = [16, 78], strides = [1, 1]} : vector<26x78xf32> to vector<16x78xf32>
    %97 = vector.extract_strided_slice %23 {offsets = [7, 0], sizes = [16, 78], strides = [1, 1]} : vector<26x78xf32> to vector<16x78xf32>
    %98 = vector.extract_strided_slice %23 {offsets = [8, 0], sizes = [16, 78], strides = [1, 1]} : vector<26x78xf32> to vector<16x78xf32>
    %99 = vector.extract_strided_slice %23 {offsets = [9, 0], sizes = [16, 78], strides = [1, 1]} : vector<26x78xf32> to vector<16x78xf32>
    %100 = vector.extract_strided_slice %23 {offsets = [10, 0], sizes = [16, 78], strides = [1, 1]} : vector<26x78xf32> to vector<16x78xf32>
    %cst_45 = arith.constant 0.266011745 : f32
    %101 = vector.broadcast %cst_45 : f32 to vector<16x78xf32>
    %102 = arith.mulf %101, %95 : vector<16x78xf32>
    %103 = arith.addf %90, %100 : vector<16x78xf32>
    %cst_46 = arith.constant 0.00102838036 : f32
    %104 = vector.broadcast %cst_46 : f32 to vector<16x78xf32>
    %105 = arith.mulf %104, %103 : vector<16x78xf32>
    %106 = arith.addf %102, %105 : vector<16x78xf32>
    %107 = arith.addf %91, %99 : vector<16x78xf32>
    %cst_47 = arith.constant 0.00759875635 : f32
    %108 = vector.broadcast %cst_47 : f32 to vector<16x78xf32>
    %109 = arith.mulf %108, %107 : vector<16x78xf32>
    %110 = arith.addf %106, %109 : vector<16x78xf32>
    %111 = arith.addf %92, %98 : vector<16x78xf32>
    %cst_48 = arith.constant 0.0360007733 : f32
    %112 = vector.broadcast %cst_48 : f32 to vector<16x78xf32>
    %113 = arith.mulf %112, %111 : vector<16x78xf32>
    %114 = arith.addf %110, %113 : vector<16x78xf32>
    %115 = arith.addf %93, %97 : vector<16x78xf32>
    %cst_49 = arith.constant 0.109360687 : f32
    %116 = vector.broadcast %cst_49 : f32 to vector<16x78xf32>
    %117 = arith.mulf %116, %115 : vector<16x78xf32>
    %118 = arith.addf %114, %117 : vector<16x78xf32>
    %119 = arith.addf %94, %96 : vector<16x78xf32>
    %cst_50 = arith.constant 0.213005543 : f32
    %120 = vector.broadcast %cst_50 : f32 to vector<16x78xf32>
    %121 = arith.mulf %120, %119 : vector<16x78xf32>
    %122 = arith.addf %118, %121 : vector<16x78xf32>
    %123 = vector.extract_strided_slice %122 {offsets = [0, 0], sizes = [16, 68], strides = [1, 1]} : vector<16x78xf32> to vector<16x68xf32>
    %124 = vector.extract_strided_slice %122 {offsets = [0, 1], sizes = [16, 68], strides = [1, 1]} : vector<16x78xf32> to vector<16x68xf32>
    %125 = vector.extract_strided_slice %122 {offsets = [0, 2], sizes = [16, 68], strides = [1, 1]} : vector<16x78xf32> to vector<16x68xf32>
    %126 = vector.extract_strided_slice %122 {offsets = [0, 3], sizes = [16, 68], strides = [1, 1]} : vector<16x78xf32> to vector<16x68xf32>
    %127 = vector.extract_strided_slice %122 {offsets = [0, 4], sizes = [16, 68], strides = [1, 1]} : vector<16x78xf32> to vector<16x68xf32>
    %128 = vector.extract_strided_slice %122 {offsets = [0, 5], sizes = [16, 68], strides = [1, 1]} : vector<16x78xf32> to vector<16x68xf32>
    %129 = vector.extract_strided_slice %122 {offsets = [0, 6], sizes = [16, 68], strides = [1, 1]} : vector<16x78xf32> to vector<16x68xf32>
    %130 = vector.extract_strided_slice %122 {offsets = [0, 7], sizes = [16, 68], strides = [1, 1]} : vector<16x78xf32> to vector<16x68xf32>
    %131 = vector.extract_strided_slice %122 {offsets = [0, 8], sizes = [16, 68], strides = [1, 1]} : vector<16x78xf32> to vector<16x68xf32>
    %132 = vector.extract_strided_slice %122 {offsets = [0, 9], sizes = [16, 68], strides = [1, 1]} : vector<16x78xf32> to vector<16x68xf32>
    %133 = vector.extract_strided_slice %122 {offsets = [0, 10], sizes = [16, 68], strides = [1, 1]} : vector<16x78xf32> to vector<16x68xf32>
    %cst_51 = arith.constant 0.266011745 : f32
    %134 = vector.broadcast %cst_51 : f32 to vector<16x68xf32>
    %135 = arith.mulf %134, %128 : vector<16x68xf32>
    %136 = arith.addf %123, %133 : vector<16x68xf32>
    %cst_52 = arith.constant 0.00102838036 : f32
    %137 = vector.broadcast %cst_52 : f32 to vector<16x68xf32>
    %138 = arith.mulf %137, %136 : vector<16x68xf32>
    %139 = arith.addf %135, %138 : vector<16x68xf32>
    %140 = arith.addf %124, %132 : vector<16x68xf32>
    %cst_53 = arith.constant 0.00759875635 : f32
    %141 = vector.broadcast %cst_53 : f32 to vector<16x68xf32>
    %142 = arith.mulf %141, %140 : vector<16x68xf32>
    %143 = arith.addf %139, %142 : vector<16x68xf32>
    %144 = arith.addf %125, %131 : vector<16x68xf32>
    %cst_54 = arith.constant 0.0360007733 : f32
    %145 = vector.broadcast %cst_54 : f32 to vector<16x68xf32>
    %146 = arith.mulf %145, %144 : vector<16x68xf32>
    %147 = arith.addf %143, %146 : vector<16x68xf32>
    %148 = arith.addf %126, %130 : vector<16x68xf32>
    %cst_55 = arith.constant 0.109360687 : f32
    %149 = vector.broadcast %cst_55 : f32 to vector<16x68xf32>
    %150 = arith.mulf %149, %148 : vector<16x68xf32>
    %151 = arith.addf %147, %150 : vector<16x68xf32>
    %152 = arith.addf %127, %129 : vector<16x68xf32>
    %cst_56 = arith.constant 0.213005543 : f32
    %153 = vector.broadcast %cst_56 : f32 to vector<16x68xf32>
    %154 = arith.mulf %153, %152 : vector<16x68xf32>
    %155 = arith.addf %151, %154 : vector<16x68xf32>
    %156 = arith.mulf %22, %22 : vector<26x78xf32>
    %157 = vector.extract_strided_slice %156 {offsets = [0, 0], sizes = [16, 78], strides = [1, 1]} : vector<26x78xf32> to vector<16x78xf32>
    %158 = vector.extract_strided_slice %156 {offsets = [1, 0], sizes = [16, 78], strides = [1, 1]} : vector<26x78xf32> to vector<16x78xf32>
    %159 = vector.extract_strided_slice %156 {offsets = [2, 0], sizes = [16, 78], strides = [1, 1]} : vector<26x78xf32> to vector<16x78xf32>
    %160 = vector.extract_strided_slice %156 {offsets = [3, 0], sizes = [16, 78], strides = [1, 1]} : vector<26x78xf32> to vector<16x78xf32>
    %161 = vector.extract_strided_slice %156 {offsets = [4, 0], sizes = [16, 78], strides = [1, 1]} : vector<26x78xf32> to vector<16x78xf32>
    %162 = vector.extract_strided_slice %156 {offsets = [5, 0], sizes = [16, 78], strides = [1, 1]} : vector<26x78xf32> to vector<16x78xf32>
    %163 = vector.extract_strided_slice %156 {offsets = [6, 0], sizes = [16, 78], strides = [1, 1]} : vector<26x78xf32> to vector<16x78xf32>
    %164 = vector.extract_strided_slice %156 {offsets = [7, 0], sizes = [16, 78], strides = [1, 1]} : vector<26x78xf32> to vector<16x78xf32>
    %165 = vector.extract_strided_slice %156 {offsets = [8, 0], sizes = [16, 78], strides = [1, 1]} : vector<26x78xf32> to vector<16x78xf32>
    %166 = vector.extract_strided_slice %156 {offsets = [9, 0], sizes = [16, 78], strides = [1, 1]} : vector<26x78xf32> to vector<16x78xf32>
    %167 = vector.extract_strided_slice %156 {offsets = [10, 0], sizes = [16, 78], strides = [1, 1]} : vector<26x78xf32> to vector<16x78xf32>
    %cst_57 = arith.constant 0.266011745 : f32
    %168 = vector.broadcast %cst_57 : f32 to vector<16x78xf32>
    %169 = arith.mulf %168, %162 : vector<16x78xf32>
    %170 = arith.addf %157, %167 : vector<16x78xf32>
    %cst_58 = arith.constant 0.00102838036 : f32
    %171 = vector.broadcast %cst_58 : f32 to vector<16x78xf32>
    %172 = arith.mulf %171, %170 : vector<16x78xf32>
    %173 = arith.addf %169, %172 : vector<16x78xf32>
    %174 = arith.addf %158, %166 : vector<16x78xf32>
    %cst_59 = arith.constant 0.00759875635 : f32
    %175 = vector.broadcast %cst_59 : f32 to vector<16x78xf32>
    %176 = arith.mulf %175, %174 : vector<16x78xf32>
    %177 = arith.addf %173, %176 : vector<16x78xf32>
    %178 = arith.addf %159, %165 : vector<16x78xf32>
    %cst_60 = arith.constant 0.0360007733 : f32
    %179 = vector.broadcast %cst_60 : f32 to vector<16x78xf32>
    %180 = arith.mulf %179, %178 : vector<16x78xf32>
    %181 = arith.addf %177, %180 : vector<16x78xf32>
    %182 = arith.addf %160, %164 : vector<16x78xf32>
    %cst_61 = arith.constant 0.109360687 : f32
    %183 = vector.broadcast %cst_61 : f32 to vector<16x78xf32>
    %184 = arith.mulf %183, %182 : vector<16x78xf32>
    %185 = arith.addf %181, %184 : vector<16x78xf32>
    %186 = arith.addf %161, %163 : vector<16x78xf32>
    %cst_62 = arith.constant 0.213005543 : f32
    %187 = vector.broadcast %cst_62 : f32 to vector<16x78xf32>
    %188 = arith.mulf %187, %186 : vector<16x78xf32>
    %189 = arith.addf %185, %188 : vector<16x78xf32>
    %190 = vector.extract_strided_slice %189 {offsets = [0, 0], sizes = [16, 68], strides = [1, 1]} : vector<16x78xf32> to vector<16x68xf32>
    %191 = vector.extract_strided_slice %189 {offsets = [0, 1], sizes = [16, 68], strides = [1, 1]} : vector<16x78xf32> to vector<16x68xf32>
    %192 = vector.extract_strided_slice %189 {offsets = [0, 2], sizes = [16, 68], strides = [1, 1]} : vector<16x78xf32> to vector<16x68xf32>
    %193 = vector.extract_strided_slice %189 {offsets = [0, 3], sizes = [16, 68], strides = [1, 1]} : vector<16x78xf32> to vector<16x68xf32>
    %194 = vector.extract_strided_slice %189 {offsets = [0, 4], sizes = [16, 68], strides = [1, 1]} : vector<16x78xf32> to vector<16x68xf32>
    %195 = vector.extract_strided_slice %189 {offsets = [0, 5], sizes = [16, 68], strides = [1, 1]} : vector<16x78xf32> to vector<16x68xf32>
    %196 = vector.extract_strided_slice %189 {offsets = [0, 6], sizes = [16, 68], strides = [1, 1]} : vector<16x78xf32> to vector<16x68xf32>
    %197 = vector.extract_strided_slice %189 {offsets = [0, 7], sizes = [16, 68], strides = [1, 1]} : vector<16x78xf32> to vector<16x68xf32>
    %198 = vector.extract_strided_slice %189 {offsets = [0, 8], sizes = [16, 68], strides = [1, 1]} : vector<16x78xf32> to vector<16x68xf32>
    %199 = vector.extract_strided_slice %189 {offsets = [0, 9], sizes = [16, 68], strides = [1, 1]} : vector<16x78xf32> to vector<16x68xf32>
    %200 = vector.extract_strided_slice %189 {offsets = [0, 10], sizes = [16, 68], strides = [1, 1]} : vector<16x78xf32> to vector<16x68xf32>
    %cst_63 = arith.constant 0.266011745 : f32
    %201 = vector.broadcast %cst_63 : f32 to vector<16x68xf32>
    %202 = arith.mulf %201, %195 : vector<16x68xf32>
    %203 = arith.addf %190, %200 : vector<16x68xf32>
    %cst_64 = arith.constant 0.00102838036 : f32
    %204 = vector.broadcast %cst_64 : f32 to vector<16x68xf32>
    %205 = arith.mulf %204, %203 : vector<16x68xf32>
    %206 = arith.addf %202, %205 : vector<16x68xf32>
    %207 = arith.addf %191, %199 : vector<16x68xf32>
    %cst_65 = arith.constant 0.00759875635 : f32
    %208 = vector.broadcast %cst_65 : f32 to vector<16x68xf32>
    %209 = arith.mulf %208, %207 : vector<16x68xf32>
    %210 = arith.addf %206, %209 : vector<16x68xf32>
    %211 = arith.addf %192, %198 : vector<16x68xf32>
    %cst_66 = arith.constant 0.0360007733 : f32
    %212 = vector.broadcast %cst_66 : f32 to vector<16x68xf32>
    %213 = arith.mulf %212, %211 : vector<16x68xf32>
    %214 = arith.addf %210, %213 : vector<16x68xf32>
    %215 = arith.addf %193, %197 : vector<16x68xf32>
    %cst_67 = arith.constant 0.109360687 : f32
    %216 = vector.broadcast %cst_67 : f32 to vector<16x68xf32>
    %217 = arith.mulf %216, %215 : vector<16x68xf32>
    %218 = arith.addf %214, %217 : vector<16x68xf32>
    %219 = arith.addf %194, %196 : vector<16x68xf32>
    %cst_68 = arith.constant 0.213005543 : f32
    %220 = vector.broadcast %cst_68 : f32 to vector<16x68xf32>
    %221 = arith.mulf %220, %219 : vector<16x68xf32>
    %222 = arith.addf %218, %221 : vector<16x68xf32>
    %223 = arith.mulf %23, %23 : vector<26x78xf32>
    %224 = vector.extract_strided_slice %223 {offsets = [0, 0], sizes = [16, 78], strides = [1, 1]} : vector<26x78xf32> to vector<16x78xf32>
    %225 = vector.extract_strided_slice %223 {offsets = [1, 0], sizes = [16, 78], strides = [1, 1]} : vector<26x78xf32> to vector<16x78xf32>
    %226 = vector.extract_strided_slice %223 {offsets = [2, 0], sizes = [16, 78], strides = [1, 1]} : vector<26x78xf32> to vector<16x78xf32>
    %227 = vector.extract_strided_slice %223 {offsets = [3, 0], sizes = [16, 78], strides = [1, 1]} : vector<26x78xf32> to vector<16x78xf32>
    %228 = vector.extract_strided_slice %223 {offsets = [4, 0], sizes = [16, 78], strides = [1, 1]} : vector<26x78xf32> to vector<16x78xf32>
    %229 = vector.extract_strided_slice %223 {offsets = [5, 0], sizes = [16, 78], strides = [1, 1]} : vector<26x78xf32> to vector<16x78xf32>
    %230 = vector.extract_strided_slice %223 {offsets = [6, 0], sizes = [16, 78], strides = [1, 1]} : vector<26x78xf32> to vector<16x78xf32>
    %231 = vector.extract_strided_slice %223 {offsets = [7, 0], sizes = [16, 78], strides = [1, 1]} : vector<26x78xf32> to vector<16x78xf32>
    %232 = vector.extract_strided_slice %223 {offsets = [8, 0], sizes = [16, 78], strides = [1, 1]} : vector<26x78xf32> to vector<16x78xf32>
    %233 = vector.extract_strided_slice %223 {offsets = [9, 0], sizes = [16, 78], strides = [1, 1]} : vector<26x78xf32> to vector<16x78xf32>
    %234 = vector.extract_strided_slice %223 {offsets = [10, 0], sizes = [16, 78], strides = [1, 1]} : vector<26x78xf32> to vector<16x78xf32>
    %cst_69 = arith.constant 0.266011745 : f32
    %235 = vector.broadcast %cst_69 : f32 to vector<16x78xf32>
    %236 = arith.mulf %235, %229 : vector<16x78xf32>
    %237 = arith.addf %224, %234 : vector<16x78xf32>
    %cst_70 = arith.constant 0.00102838036 : f32
    %238 = vector.broadcast %cst_70 : f32 to vector<16x78xf32>
    %239 = arith.mulf %238, %237 : vector<16x78xf32>
    %240 = arith.addf %236, %239 : vector<16x78xf32>
    %241 = arith.addf %225, %233 : vector<16x78xf32>
    %cst_71 = arith.constant 0.00759875635 : f32
    %242 = vector.broadcast %cst_71 : f32 to vector<16x78xf32>
    %243 = arith.mulf %242, %241 : vector<16x78xf32>
    %244 = arith.addf %240, %243 : vector<16x78xf32>
    %245 = arith.addf %226, %232 : vector<16x78xf32>
    %cst_72 = arith.constant 0.0360007733 : f32
    %246 = vector.broadcast %cst_72 : f32 to vector<16x78xf32>
    %247 = arith.mulf %246, %245 : vector<16x78xf32>
    %248 = arith.addf %244, %247 : vector<16x78xf32>
    %249 = arith.addf %227, %231 : vector<16x78xf32>
    %cst_73 = arith.constant 0.109360687 : f32
    %250 = vector.broadcast %cst_73 : f32 to vector<16x78xf32>
    %251 = arith.mulf %250, %249 : vector<16x78xf32>
    %252 = arith.addf %248, %251 : vector<16x78xf32>
    %253 = arith.addf %228, %230 : vector<16x78xf32>
    %cst_74 = arith.constant 0.213005543 : f32
    %254 = vector.broadcast %cst_74 : f32 to vector<16x78xf32>
    %255 = arith.mulf %254, %253 : vector<16x78xf32>
    %256 = arith.addf %252, %255 : vector<16x78xf32>
    %257 = vector.extract_strided_slice %256 {offsets = [0, 0], sizes = [16, 68], strides = [1, 1]} : vector<16x78xf32> to vector<16x68xf32>
    %258 = vector.extract_strided_slice %256 {offsets = [0, 1], sizes = [16, 68], strides = [1, 1]} : vector<16x78xf32> to vector<16x68xf32>
    %259 = vector.extract_strided_slice %256 {offsets = [0, 2], sizes = [16, 68], strides = [1, 1]} : vector<16x78xf32> to vector<16x68xf32>
    %260 = vector.extract_strided_slice %256 {offsets = [0, 3], sizes = [16, 68], strides = [1, 1]} : vector<16x78xf32> to vector<16x68xf32>
    %261 = vector.extract_strided_slice %256 {offsets = [0, 4], sizes = [16, 68], strides = [1, 1]} : vector<16x78xf32> to vector<16x68xf32>
    %262 = vector.extract_strided_slice %256 {offsets = [0, 5], sizes = [16, 68], strides = [1, 1]} : vector<16x78xf32> to vector<16x68xf32>
    %263 = vector.extract_strided_slice %256 {offsets = [0, 6], sizes = [16, 68], strides = [1, 1]} : vector<16x78xf32> to vector<16x68xf32>
    %264 = vector.extract_strided_slice %256 {offsets = [0, 7], sizes = [16, 68], strides = [1, 1]} : vector<16x78xf32> to vector<16x68xf32>
    %265 = vector.extract_strided_slice %256 {offsets = [0, 8], sizes = [16, 68], strides = [1, 1]} : vector<16x78xf32> to vector<16x68xf32>
    %266 = vector.extract_strided_slice %256 {offsets = [0, 9], sizes = [16, 68], strides = [1, 1]} : vector<16x78xf32> to vector<16x68xf32>
    %267 = vector.extract_strided_slice %256 {offsets = [0, 10], sizes = [16, 68], strides = [1, 1]} : vector<16x78xf32> to vector<16x68xf32>
    %cst_75 = arith.constant 0.266011745 : f32
    %268 = vector.broadcast %cst_75 : f32 to vector<16x68xf32>
    %269 = arith.mulf %268, %262 : vector<16x68xf32>
    %270 = arith.addf %257, %267 : vector<16x68xf32>
    %cst_76 = arith.constant 0.00102838036 : f32
    %271 = vector.broadcast %cst_76 : f32 to vector<16x68xf32>
    %272 = arith.mulf %271, %270 : vector<16x68xf32>
    %273 = arith.addf %269, %272 : vector<16x68xf32>
    %274 = arith.addf %258, %266 : vector<16x68xf32>
    %cst_77 = arith.constant 0.00759875635 : f32
    %275 = vector.broadcast %cst_77 : f32 to vector<16x68xf32>
    %276 = arith.mulf %275, %274 : vector<16x68xf32>
    %277 = arith.addf %273, %276 : vector<16x68xf32>
    %278 = arith.addf %259, %265 : vector<16x68xf32>
    %cst_78 = arith.constant 0.0360007733 : f32
    %279 = vector.broadcast %cst_78 : f32 to vector<16x68xf32>
    %280 = arith.mulf %279, %278 : vector<16x68xf32>
    %281 = arith.addf %277, %280 : vector<16x68xf32>
    %282 = arith.addf %260, %264 : vector<16x68xf32>
    %cst_79 = arith.constant 0.109360687 : f32
    %283 = vector.broadcast %cst_79 : f32 to vector<16x68xf32>
    %284 = arith.mulf %283, %282 : vector<16x68xf32>
    %285 = arith.addf %281, %284 : vector<16x68xf32>
    %286 = arith.addf %261, %263 : vector<16x68xf32>
    %cst_80 = arith.constant 0.213005543 : f32
    %287 = vector.broadcast %cst_80 : f32 to vector<16x68xf32>
    %288 = arith.mulf %287, %286 : vector<16x68xf32>
    %289 = arith.addf %285, %288 : vector<16x68xf32>
    %290 = arith.mulf %22, %23 : vector<26x78xf32>
    %291 = vector.extract_strided_slice %290 {offsets = [0, 0], sizes = [16, 78], strides = [1, 1]} : vector<26x78xf32> to vector<16x78xf32>
    %292 = vector.extract_strided_slice %290 {offsets = [1, 0], sizes = [16, 78], strides = [1, 1]} : vector<26x78xf32> to vector<16x78xf32>
    %293 = vector.extract_strided_slice %290 {offsets = [2, 0], sizes = [16, 78], strides = [1, 1]} : vector<26x78xf32> to vector<16x78xf32>
    %294 = vector.extract_strided_slice %290 {offsets = [3, 0], sizes = [16, 78], strides = [1, 1]} : vector<26x78xf32> to vector<16x78xf32>
    %295 = vector.extract_strided_slice %290 {offsets = [4, 0], sizes = [16, 78], strides = [1, 1]} : vector<26x78xf32> to vector<16x78xf32>
    %296 = vector.extract_strided_slice %290 {offsets = [5, 0], sizes = [16, 78], strides = [1, 1]} : vector<26x78xf32> to vector<16x78xf32>
    %297 = vector.extract_strided_slice %290 {offsets = [6, 0], sizes = [16, 78], strides = [1, 1]} : vector<26x78xf32> to vector<16x78xf32>
    %298 = vector.extract_strided_slice %290 {offsets = [7, 0], sizes = [16, 78], strides = [1, 1]} : vector<26x78xf32> to vector<16x78xf32>
    %299 = vector.extract_strided_slice %290 {offsets = [8, 0], sizes = [16, 78], strides = [1, 1]} : vector<26x78xf32> to vector<16x78xf32>
    %300 = vector.extract_strided_slice %290 {offsets = [9, 0], sizes = [16, 78], strides = [1, 1]} : vector<26x78xf32> to vector<16x78xf32>
    %301 = vector.extract_strided_slice %290 {offsets = [10, 0], sizes = [16, 78], strides = [1, 1]} : vector<26x78xf32> to vector<16x78xf32>
    %cst_81 = arith.constant 0.266011745 : f32
    %302 = vector.broadcast %cst_81 : f32 to vector<16x78xf32>
    %303 = arith.mulf %302, %296 : vector<16x78xf32>
    %304 = arith.addf %291, %301 : vector<16x78xf32>
    %cst_82 = arith.constant 0.00102838036 : f32
    %305 = vector.broadcast %cst_82 : f32 to vector<16x78xf32>
    %306 = arith.mulf %305, %304 : vector<16x78xf32>
    %307 = arith.addf %303, %306 : vector<16x78xf32>
    %308 = arith.addf %292, %300 : vector<16x78xf32>
    %cst_83 = arith.constant 0.00759875635 : f32
    %309 = vector.broadcast %cst_83 : f32 to vector<16x78xf32>
    %310 = arith.mulf %309, %308 : vector<16x78xf32>
    %311 = arith.addf %307, %310 : vector<16x78xf32>
    %312 = arith.addf %293, %299 : vector<16x78xf32>
    %cst_84 = arith.constant 0.0360007733 : f32
    %313 = vector.broadcast %cst_84 : f32 to vector<16x78xf32>
    %314 = arith.mulf %313, %312 : vector<16x78xf32>
    %315 = arith.addf %311, %314 : vector<16x78xf32>
    %316 = arith.addf %294, %298 : vector<16x78xf32>
    %cst_85 = arith.constant 0.109360687 : f32
    %317 = vector.broadcast %cst_85 : f32 to vector<16x78xf32>
    %318 = arith.mulf %317, %316 : vector<16x78xf32>
    %319 = arith.addf %315, %318 : vector<16x78xf32>
    %320 = arith.addf %295, %297 : vector<16x78xf32>
    %cst_86 = arith.constant 0.213005543 : f32
    %321 = vector.broadcast %cst_86 : f32 to vector<16x78xf32>
    %322 = arith.mulf %321, %320 : vector<16x78xf32>
    %323 = arith.addf %319, %322 : vector<16x78xf32>
    %324 = vector.extract_strided_slice %323 {offsets = [0, 0], sizes = [16, 68], strides = [1, 1]} : vector<16x78xf32> to vector<16x68xf32>
    %325 = vector.extract_strided_slice %323 {offsets = [0, 1], sizes = [16, 68], strides = [1, 1]} : vector<16x78xf32> to vector<16x68xf32>
    %326 = vector.extract_strided_slice %323 {offsets = [0, 2], sizes = [16, 68], strides = [1, 1]} : vector<16x78xf32> to vector<16x68xf32>
    %327 = vector.extract_strided_slice %323 {offsets = [0, 3], sizes = [16, 68], strides = [1, 1]} : vector<16x78xf32> to vector<16x68xf32>
    %328 = vector.extract_strided_slice %323 {offsets = [0, 4], sizes = [16, 68], strides = [1, 1]} : vector<16x78xf32> to vector<16x68xf32>
    %329 = vector.extract_strided_slice %323 {offsets = [0, 5], sizes = [16, 68], strides = [1, 1]} : vector<16x78xf32> to vector<16x68xf32>
    %330 = vector.extract_strided_slice %323 {offsets = [0, 6], sizes = [16, 68], strides = [1, 1]} : vector<16x78xf32> to vector<16x68xf32>
    %331 = vector.extract_strided_slice %323 {offsets = [0, 7], sizes = [16, 68], strides = [1, 1]} : vector<16x78xf32> to vector<16x68xf32>
    %332 = vector.extract_strided_slice %323 {offsets = [0, 8], sizes = [16, 68], strides = [1, 1]} : vector<16x78xf32> to vector<16x68xf32>
    %333 = vector.extract_strided_slice %323 {offsets = [0, 9], sizes = [16, 68], strides = [1, 1]} : vector<16x78xf32> to vector<16x68xf32>
    %334 = vector.extract_strided_slice %323 {offsets = [0, 10], sizes = [16, 68], strides = [1, 1]} : vector<16x78xf32> to vector<16x68xf32>
    %cst_87 = arith.constant 0.266011745 : f32
    %335 = vector.broadcast %cst_87 : f32 to vector<16x68xf32>
    %336 = arith.mulf %335, %329 : vector<16x68xf32>
    %337 = arith.addf %324, %334 : vector<16x68xf32>
    %cst_88 = arith.constant 0.00102838036 : f32
    %338 = vector.broadcast %cst_88 : f32 to vector<16x68xf32>
    %339 = arith.mulf %338, %337 : vector<16x68xf32>
    %340 = arith.addf %336, %339 : vector<16x68xf32>
    %341 = arith.addf %325, %333 : vector<16x68xf32>
    %cst_89 = arith.constant 0.00759875635 : f32
    %342 = vector.broadcast %cst_89 : f32 to vector<16x68xf32>
    %343 = arith.mulf %342, %341 : vector<16x68xf32>
    %344 = arith.addf %340, %343 : vector<16x68xf32>
    %345 = arith.addf %326, %332 : vector<16x68xf32>
    %cst_90 = arith.constant 0.0360007733 : f32
    %346 = vector.broadcast %cst_90 : f32 to vector<16x68xf32>
    %347 = arith.mulf %346, %345 : vector<16x68xf32>
    %348 = arith.addf %344, %347 : vector<16x68xf32>
    %349 = arith.addf %327, %331 : vector<16x68xf32>
    %cst_91 = arith.constant 0.109360687 : f32
    %350 = vector.broadcast %cst_91 : f32 to vector<16x68xf32>
    %351 = arith.mulf %350, %349 : vector<16x68xf32>
    %352 = arith.addf %348, %351 : vector<16x68xf32>
    %353 = arith.addf %328, %330 : vector<16x68xf32>
    %cst_92 = arith.constant 0.213005543 : f32
    %354 = vector.broadcast %cst_92 : f32 to vector<16x68xf32>
    %355 = arith.mulf %354, %353 : vector<16x68xf32>
    %356 = arith.addf %352, %355 : vector<16x68xf32>
    %357 = arith.mulf %89, %89 : vector<16x68xf32>
    %358 = arith.mulf %155, %155 : vector<16x68xf32>
    %359 = arith.subf %222, %357 : vector<16x68xf32>
    %360 = arith.subf %289, %358 : vector<16x68xf32>
    %361 = arith.mulf %89, %155 : vector<16x68xf32>
    %362 = arith.subf %356, %361 : vector<16x68xf32>
    %cst_93 = arith.constant 2.000000e+00 : f32
    %363 = vector.broadcast %cst_93 : f32 to vector<16x68xf32>
    %364 = arith.mulf %363, %89 : vector<16x68xf32>
    %365 = arith.mulf %364, %155 : vector<16x68xf32>
    %cst_94 = arith.constant 9.99999974E-5 : f32
    %366 = vector.broadcast %cst_94 : f32 to vector<16x68xf32>
    %367 = arith.addf %365, %366 : vector<16x68xf32>
    %cst_95 = arith.constant 2.000000e+00 : f32
    %368 = vector.broadcast %cst_95 : f32 to vector<16x68xf32>
    %369 = arith.mulf %368, %362 : vector<16x68xf32>
    %cst_96 = arith.constant 8.99999984E-4 : f32
    %370 = vector.broadcast %cst_96 : f32 to vector<16x68xf32>
    %371 = arith.addf %369, %370 : vector<16x68xf32>
    %372 = arith.mulf %367, %371 : vector<16x68xf32>
    %373 = arith.addf %357, %358 : vector<16x68xf32>
    %cst_97 = arith.constant 9.99999974E-5 : f32
    %374 = vector.broadcast %cst_97 : f32 to vector<16x68xf32>
    %375 = arith.addf %373, %374 : vector<16x68xf32>
    %376 = arith.addf %359, %360 : vector<16x68xf32>
    %cst_98 = arith.constant 8.99999984E-4 : f32
    %377 = vector.broadcast %cst_98 : f32 to vector<16x68xf32>
    %378 = arith.addf %376, %377 : vector<16x68xf32>
    %379 = arith.mulf %375, %378 : vector<16x68xf32>
    %cst_99 = arith.constant 9.99999996E-13 : f32
    %380 = vector.broadcast %cst_99 : f32 to vector<16x68xf32>
    %381 = arith.addf %379, %380 : vector<16x68xf32>
    %382 = tpu.reciprocal %381 : vector<16x68xf32> -> vector<16x68xf32>
    %383 = arith.mulf %372, %382 : vector<16x68xf32>
    %384 = vector.extract_strided_slice %383 {offsets = [0, 0], sizes = [16, 16], strides = [1, 1]} : vector<16x68xf32> to vector<16x16xf32>
    %c0_100 = arith.constant 0 : index
    %c0_101 = arith.constant 0 : index
    %c0_102 = arith.constant 0 : index
    %385 = vector.load %arg3[%c0_100, %c0_101, %c0_102] : memref<3x16x16xf32, #tpu.memory_space<vmem>>, vector<1x16x16xf32>
    %386 = vector.shape_cast %385 : vector<1x16x16xf32> to vector<16x16xf32>
    %387 = vector.shape_cast %384 : vector<16x16xf32> to vector<1x16x16xf32>
    tpu.vector_store %arg3[%c0_100, %c0_101, %c0_102], %387 {strides = array<i32>} : memref<3x16x16xf32, #tpu.memory_space<vmem>>, vector<1x16x16xf32>,
    %388 = vector.extract_strided_slice %383 {offsets = [0, 26], sizes = [16, 16], strides = [1, 1]} : vector<16x68xf32> to vector<16x16xf32>
    %c1_103 = arith.constant 1 : index
    %c0_104 = arith.constant 0 : index
    %c0_105 = arith.constant 0 : index
    %389 = vector.load %arg3[%c1_103, %c0_104, %c0_105] : memref<3x16x16xf32, #tpu.memory_space<vmem>>, vector<1x16x16xf32>
    %390 = vector.shape_cast %389 : vector<1x16x16xf32> to vector<16x16xf32>
    %391 = vector.shape_cast %388 : vector<16x16xf32> to vector<1x16x16xf32>
    tpu.vector_store %arg3[%c1_103, %c0_104, %c0_105], %391 {strides = array<i32>} : memref<3x16x16xf32, #tpu.memory_space<vmem>>, vector<1x16x16xf32>,
    %392 = vector.extract_strided_slice %383 {offsets = [0, 52], sizes = [16, 16], strides = [1, 1]} : vector<16x68xf32> to vector<16x16xf32>
    %c2_106 = arith.constant 2 : index
    %c0_107 = arith.constant 0 : index
    %c0_108 = arith.constant 0 : index
    %393 = vector.load %arg3[%c2_106, %c0_107, %c0_108] : memref<3x16x16xf32, #tpu.memory_space<vmem>>, vector<1x16x16xf32>
    %394 = vector.shape_cast %393 : vector<1x16x16xf32> to vector<16x16xf32>
    %395 = vector.shape_cast %392 : vector<16x16xf32> to vector<1x16x16xf32>
    tpu.vector_store %arg3[%c2_106, %c0_107, %c0_108], %395 {strides = array<i32>} : memref<3x16x16xf32, #tpu.memory_space<vmem>>, vector<1x16x16xf32>,
    return
  }
  func.func @transform_0(%arg0: i32) -> (i32, i32, i32) {
    %c0_i32 = arith.constant 0 : i32
    %c0_i32_0 = arith.constant 0 : i32
    %c0_i32_1 = arith.constant 0 : i32
    return %arg0, %c0_i32, %c0_i32_0 : i32, i32, i32
  }
  func.func @transform_1(%arg0: i32) -> (i32, i32, i32) {
    %c0_i32 = arith.constant 0 : i32
    %c0_i32_0 = arith.constant 0 : i32
    %c0_i32_1 = arith.constant 0 : i32
    return %arg0, %c0_i32, %c0_i32_0 : i32, i32, i32
  }
  func.func @transform_2(%arg0: i32) -> (i32, i32, i32) {
    %c0_i32 = arith.constant 0 : i32
    %c0_i32_0 = arith.constant 0 : i32
    %c0_i32_1 = arith.constant 0 : i32
    return %arg0, %c0_i32, %c0_i32_0 : i32, i32, i32
  }
}

</mosaic_0001>

<llo_original>
// kernel: ssim_map_pallas.1
$region0: #{ssim_map_pallas.1}
  #allocation0 [shape = 'u32[]', space=smem, size = 0x4, offset = 0x4, fixed_abs, tag = 'smem constant byte address 0x4 - core index']
  #allocation1 [shape = 'u32[144,128]{1,0:T(1,128)}', space=vmem, size = 0x12000, scoped, tag = 'internal scratch']
  #allocation2 [shape = 'f32[26,78]{1,0:T(8,128)}', space=vmem, size = 0x4000, scoped, tag = 'scratch operand']
  #allocation3 [shape = 'f32[26,78]{1,0:T(8,128)}', space=vmem, size = 0x4000, scoped, tag = 'scratch operand']
  %s0 = inlined_call_operand.hbm [shape: f32[6,16,16], index: 0, kind: input, shape index: {}]
  %s1 = inlined_call_operand.hbm [shape: f32[6,16,16], index: 1, kind: input, shape index: {}]
  %s2 = inlined_call_operand.hbm [shape: f32[6,16,16], index: 2, kind: output, shape index: {}]
  %s3 = sld [smem:[#allocation0]]
  $region49: #{ssim_map_pallas.1} parent=0
    _
  %s5 = ssub.s32 1, %s3
  %s6 = scalar_select 0, %s5, %s3
  $region1: #{ssim_map_pallas.1} parent=0
    #allocation4 [shape = 'u8[49152]{0}', space=vmem, size = 0xc000, scoped, tag = 'input window, operand 0']
    #allocation5 [shape = 's32[2]{0}', space=sflag, size = 0x8, scoped, tag = 'scoped memory for ssim_map_pallas.1']
    #allocation6 [shape = 's32[2]{0}', space=sflag, size = 0x8, scoped, tag = 'scoped memory for ssim_map_pallas.1']
    #allocation7 [shape = 'u8[49152]{0}', space=vmem, size = 0xc000, scoped, tag = 'input window, operand 1']
    #allocation8 [shape = 's32[2]{0}', space=sflag, size = 0x8, scoped, tag = 'scoped memory for ssim_map_pallas.1']
    #allocation9 [shape = 'u8[49152]{0}', space=vmem, size = 0xc000, scoped, tag = 'output window, operand 0']
    %7 = vsyncpa [#allocation5], 0
    %s8 = scalar_lea.sflag [#allocation5], 1
    %9 = vsyncpa %s8, 0
    %10 = vsyncpa [#allocation8], 0
    %s11 = scalar_lea.sflag [#allocation8], 1
    %12 = vsyncpa %s11, 0
    %13 = vsyncpa [#allocation6], 0
    %s14 = scalar_lea.sflag [#allocation6], 1
    %15 = vsyncpa %s14, 0
    loop: start=0, step=1, limit=4
    $region2: #{ssim_map_pallas.1} parent=1 // loop_pre_header
      _
    $region3: #{ssim_map_pallas.1} parent=1 // loop_header
      %s17 = sphi 0, %s21
      %p18 = scmp.ge.s32.totalorder %s17, 4
      %s27 = sphi 0, %s29
      %s30 = sphi 0, %s27
      %s31 = sphi 0, %s30
      %s47 = sphi 0, %s31
      %s53 = sphi 0, %s55
      %s56 = sphi 0, %s53
      %s57 = sphi 0, %s56
      %s73 = sphi 0, %s57
      %s79 = sphi 0, %s81
      %s82 = sphi 0, %s79
      %s83 = sphi 0, %s82
      %s99 = sphi 0, %s83
    $region4: #{ssim_map_pallas.1} parent=1 // loop_header_branch
      %20 = sbr.rel (%p18) target = $region8
    $region5: #{ssim_map_pallas.1} parent=1 // loop_body
      %s22 = ssub.s32 %s17, 1
      %s23 = ssub.s32 %s17, 2
      %s24 = sadd.s32 %s17, 1
      %s25 = ssub.s32 %s17, %s24
      %p26 = scmp.eq.s32.totalorder %s25, 0
      %s28 = sadd.s32 %s27, 1
      %s29 = scalar_select %p26, %s27, %s28
      %p32 = pneg %p26
      %p33 = scmp.eq.s32.totalorder %s17, 1
      %p34 = por %p32, %p33
      %p35 = scmp.ne.s32.totalorder %s27, %s30
      %p36 = scmp.eq.s32.totalorder %s17, 0
      %p37 = por %p35, %p36
      %p38 = scmp.ne.s32.totalorder %s27, %s30
      %p39 = scmp.eq.s32.totalorder %s22, 1
      %p40 = por %p38, %p39
      %p41 = scmp.ne.s32.totalorder %s30, %s31
      %p42 = scmp.eq.s32.totalorder %s22, 0
      %p43 = por %p41, %p42
      %p44 = scmp.ne.s32.totalorder %s30, %s31
      %p45 = scmp.eq.s32.totalorder %s23, 1
      %p46 = por %p44, %p45
      %p48 = scmp.ne.s32.totalorder %s31, %s47
      %p49 = scmp.eq.s32.totalorder %s23, 0
      %p50 = por %p48, %p49
      %s51 = ssub.s32 %s17, %s24
      %p52 = scmp.eq.s32.totalorder %s51, 0
      %s54 = sadd.s32 %s53, 1
      %s55 = scalar_select %p52, %s53, %s54
      %p58 = pneg %p52
      %p59 = scmp.eq.s32.totalorder %s17, 1
      %p60 = por %p58, %p59
      %p61 = scmp.ne.s32.totalorder %s53, %s56
      %p62 = scmp.eq.s32.totalorder %s17, 0
      %p63 = por %p61, %p62
      %p64 = scmp.ne.s32.totalorder %s53, %s56
      %p65 = scmp.eq.s32.totalorder %s22, 1
      %p66 = por %p64, %p65
      %p67 = scmp.ne.s32.totalorder %s56, %s57
      %p68 = scmp.eq.s32.totalorder %s22, 0
      %p69 = por %p67, %p68
      %p70 = scmp.ne.s32.totalorder %s56, %s57
      %p71 = scmp.eq.s32.totalorder %s23, 1
      %p72 = por %p70, %p71
      %p74 = scmp.ne.s32.totalorder %s57, %s73
      %p75 = scmp.eq.s32.totalorder %s23, 0
      %p76 = por %p74, %p75
      %s77 = ssub.s32 %s17, %s24
      %p78 = scmp.eq.s32.totalorder %s77, 0
      %s80 = sadd.s32 %s79, 1
      %s81 = scalar_select %p78, %s79, %s80
      %p84 = pneg %p78
      %p85 = scmp.eq.s32.totalorder %s17, 1
      %p86 = por %p84, %p85
      %p87 = scmp.ne.s32.totalorder %s79, %s82
      %p88 = scmp.eq.s32.totalorder %s17, 0
      %p89 = por %p87, %p88
      %p90 = scmp.ne.s32.totalorder %s79, %s82
      %p91 = scmp.eq.s32.totalorder %s22, 1
      %p92 = por %p90, %p91
      %p93 = scmp.ne.s32.totalorder %s82, %s83
      %p94 = scmp.eq.s32.totalorder %s22, 0
      %p95 = por %p93, %p94
      %p96 = scmp.ne.s32.totalorder %s82, %s83
      %p97 = scmp.eq.s32.totalorder %s23, 1
      %p98 = por %p96, %p97
      %p100 = scmp.ne.s32.totalorder %s83, %s99
      %p101 = scmp.eq.s32.totalorder %s23, 0
      %p102 = por %p100, %p101
      %p103 = scmp.le.s32.totalorder 1, %s17
      %p104 = scmp.lt.s32.totalorder %s17, 3
      %p105 = pnand %p103, %p104
      %p106 = pneg %p105
      // Predicated region
      $region9: #{ssim_map_pallas.1} parent=5 // pred_check
        _
      $region10: #{ssim_map_pallas.1} parent=5 // pred_check_branch
        %108 = sbr.rel (%p105) target = $region12
      $region11: #{ssim_map_pallas.1} parent=5 // pred_region
        %s109 = ssub.s32 %s17, 1
      $region12: #{ssim_map_pallas.1} parent=5 // pred_fallthru
        _
      %p110 = scmp.lt.s32.totalorder %s17, 2
      // Predicated region
      $region13: #{ssim_map_pallas.1} parent=5 // pred_check
        %p111 = pneg %p110
      $region14: #{ssim_map_pallas.1} parent=5 // pred_check_branch
        %113 = sbr.rel (%p111) target = $region16
      $region15: #{ssim_map_pallas.1} parent=5 // pred_region
        // Predicated region
        $region17: #{ssim_map_pallas.1} parent=15 // pred_check
          %p114 = pneg %p37
        $region18: #{ssim_map_pallas.1} parent=15 // pred_check_branch
          %116 = sbr.rel (%p114) target = $region20
        $region19: #{ssim_map_pallas.1} parent=15 // pred_region
          %s117 = sand.u32 %s27, 1
          %s118 = scalar_lea.sflag [#allocation5], %s117
          %s119 = sand.u32 %s27, 1
          %s120 = smul.addr %s119, 48
          %s121 = scalar_lea.vmem [#allocation4], %s120
          %s122 = smul.u32 3, %s17
          %s124 = ssub.s32 768, 768
          %125 = vsyncadd %s118, %s124
          %s126 = smul.addr %s122, 2
          %s127 = smul.addr %s126, 128
          %s128 = scalar_lea.hbm %s0, %s127
          %s129 = sshll.u32 %s121, 4
          %s130 = int_to_ptr.vmem [resolvable:$true] %s129
          %135 = dma.hbm_to_vmem [thread:$0]  %s128, 768, %s130, %s118, 128, 128, 8
        $region20: #{ssim_map_pallas.1} parent=15 // pred_fallthru
          _
        // Predicated region
        $region21: #{ssim_map_pallas.1} parent=15 // pred_check
          %p136 = pneg %p63
        $region22: #{ssim_map_pallas.1} parent=15 // pred_check_branch
          %138 = sbr.rel (%p136) target = $region24
        $region23: #{ssim_map_pallas.1} parent=15 // pred_region
          %s139 = sand.u32 %s53, 1
          %s140 = scalar_lea.sflag [#allocation8], %s139
          %s141 = sand.u32 %s53, 1
          %s142 = smul.addr %s141, 48
          %s143 = scalar_lea.vmem [#allocation7], %s142
          %s144 = smul.u32 3, %s17
          %s146 = ssub.s32 768, 768
          %147 = vsyncadd %s140, %s146
          %s148 = smul.addr %s144, 2
          %s149 = smul.addr %s148, 128
          %s150 = scalar_lea.hbm %s1, %s149
          %s151 = sshll.u32 %s143, 4
          %s152 = int_to_ptr.vmem [resolvable:$true] %s151
          %157 = dma.hbm_to_vmem [thread:$0]  %s150, 768, %s152, %s140, 128, 128, 8
        $region24: #{ssim_map_pallas.1} parent=15 // pred_fallthru
          _
      $region16: #{ssim_map_pallas.1} parent=5 // pred_fallthru
        _
      %p158 = scmp.le.s32.totalorder 1, %s17
      %p159 = scmp.lt.s32.totalorder %s17, 3
      %p160 = pnand %p158, %p159
      %p161 = pneg %p160
      // Predicated region
      $region25: #{ssim_map_pallas.1} parent=5 // pred_check
        _
      $region26: #{ssim_map_pallas.1} parent=5 // pred_check_branch
        %163 = sbr.rel (%p160) target = $region28
      $region27: #{ssim_map_pallas.1} parent=5 // pred_region
        %s164 = ssub.s32 %s17, 1
        %s165 = sand.u32 %s30, 1
        %s166 = scalar_lea.sflag [#allocation5], %s165
        %s167 = sand.u32 %s30, 1
        %s168 = smul.addr %s167, 48
        %s169 = scalar_lea.vmem [#allocation4], %s168
        // Predicated region
        $region29: #{ssim_map_pallas.1} parent=27 // pred_check
          %p170 = pneg %p43
        $region30: #{ssim_map_pallas.1} parent=27 // pred_check_branch
          %172 = sbr.rel (%p170) target = $region32
        $region31: #{ssim_map_pallas.1} parent=27 // pred_region
          %173 = dma.done %s166, 768
        $region32: #{ssim_map_pallas.1} parent=27 // pred_fallthru
          _
        %s174 = sand.u32 %s56, 1
        %s175 = scalar_lea.sflag [#allocation8], %s174
        %s176 = sand.u32 %s56, 1
        %s177 = smul.addr %s176, 48
        %s178 = scalar_lea.vmem [#allocation7], %s177
        // Predicated region
        $region33: #{ssim_map_pallas.1} parent=27 // pred_check
          %p179 = pneg %p69
        $region34: #{ssim_map_pallas.1} parent=27 // pred_check_branch
          %181 = sbr.rel (%p179) target = $region36
        $region35: #{ssim_map_pallas.1} parent=27 // pred_region
          %182 = dma.done %s175, 768
        $region36: #{ssim_map_pallas.1} parent=27 // pred_fallthru
          _
        %s183 = sand.u32 %s30, 1
        %s184 = scalar_lea.sflag [#allocation5], %s183
        %s185 = sand.u32 %s30, 1
        %s186 = smul.addr %s185, 48
        %s187 = scalar_lea.vmem [#allocation4], %s186
        %p188 = pneg %p43
        %p189 = pneg %p40
        %s190 = sand.u32 %s56, 1
        %s191 = scalar_lea.sflag [#allocation8], %s190
        %s192 = sand.u32 %s56, 1
        %s193 = smul.addr %s192, 48
        %s194 = scalar_lea.vmem [#allocation7], %s193
        %p195 = pneg %p69
        %p196 = pneg %p66
        %p197 = pneg %p95
        %p198 = pneg %p92
        %s199 = sand.u32 %s82, 1
        %s200 = scalar_lea.sflag [#allocation6], %s199
        %s201 = sand.u32 %s82, 1
        %s202 = smul.addr %s201, 48
        %s203 = scalar_lea.vmem [#allocation9], %s202
        %s204 = smul.u32 3, %s22
        %s205 = smul.u32 3, %s22
        %s206 = smul.u32 3, %s22
        %vm207 = vcmask 637952
        %208 = vst.msk [vmem:[#allocation2] sm:$0xff] %vm207, 0.0
        %209 = vst.msk [vmem:[#allocation2 + $0x8] sm:$0xff] %vm207, 0.0
        %210 = vst.msk [vmem:[#allocation2 + $0x10] sm:$0xff] %vm207, 0.0
        %vm211 = vcmask 631808
        %212 = vst.msk [vmem:[#allocation2 + $0x18] sm:$0x3] %vm211, 0.0
        %213 = vst.msk [vmem:[#allocation3] sm:$0xff] %vm207, 0.0
        %214 = vst.msk [vmem:[#allocation3 + $0x8] sm:$0xff] %vm207, 0.0
        %215 = vst.msk [vmem:[#allocation3 + $0x10] sm:$0xff] %vm207, 0.0
        %216 = vst.msk [vmem:[#allocation3 + $0x18] sm:$0x3] %vm211, 0.0
        %v217 = vld [vmem:[%s169] sm:$0xff]
        %v218 = vld [vmem:[%s169 + $0x8] sm:$0xff]
        %221 = vrot.lane.b32.xlu0 %v217, 5
        %v222 = vpop.permute.xlu0 %221
        %223 = vrot.lane.b32.xlu0 %v218, 5
        %v224 = vpop.permute.xlu0 %223
        %vm227 = vcmask 171048
        %228 = vst.msk [vmem:[#allocation2 + $0x5] sm:$0xff] %vm227, %v222
        %229 = vst.msk [vmem:[#allocation2 + $0xd] sm:$0xff] %vm227, %v224
        %v230 = vld [vmem:[%s178] sm:$0xff]
        %v231 = vld [vmem:[%s178 + $0x8] sm:$0xff]
        %234 = vrot.lane.b32.xlu0 %v230, 5
        %v235 = vpop.permute.xlu0 %234
        %236 = vrot.lane.b32.xlu0 %v231, 5
        %v237 = vpop.permute.xlu0 %236
        %240 = vst.msk [vmem:[#allocation3 + $0x5] sm:$0xff] %vm227, %v235
        %241 = vst.msk [vmem:[#allocation3 + $0xd] sm:$0xff] %vm227, %v237
        %s242 = scalar_lea.vmem %s169, 16 [#allocation4]
        %v243 = vld [vmem:[%s242] sm:$0xff]
        %v244 = vld [vmem:[%s242 + $0x8] sm:$0xff]
        %247 = vrot.lane.b32.xlu0 %v243, 31
        %v248 = vpop.permute.xlu0 %247
        %249 = vrot.lane.b32.xlu0 %v244, 31
        %v250 = vpop.permute.xlu0 %249
        %vm253 = vcmask 384248
        %254 = vst.msk [vmem:[#allocation2 + $0x5] sm:$0xff] %vm253, %v248
        %255 = vst.msk [vmem:[#allocation2 + $0xd] sm:$0xff] %vm253, %v250
        %s256 = scalar_lea.vmem %s178, 16 [#allocation7]
        %v257 = vld [vmem:[%s256] sm:$0xff]
        %v258 = vld [vmem:[%s256 + $0x8] sm:$0xff]
        %261 = vrot.lane.b32.xlu0 %v257, 31
        %v262 = vpop.permute.xlu0 %261
        %263 = vrot.lane.b32.xlu0 %v258, 31
        %v264 = vpop.permute.xlu0 %263
        %267 = vst.msk [vmem:[#allocation3 + $0x5] sm:$0xff] %vm253, %v262
        %268 = vst.msk [vmem:[#allocation3 + $0xd] sm:$0xff] %vm253, %v264
        %s269 = scalar_lea.vmem %s169, 32 [#allocation4]
        %v270 = vld [vmem:[%s269] sm:$0xff]
        %v271 = vld [vmem:[%s269 + $0x8] sm:$0xff]
        %274 = vrot.lane.b32.xlu0 %v270, 57
        %v275 = vpop.permute.xlu0 %274
        %276 = vrot.lane.b32.xlu0 %v271, 57
        %v277 = vpop.permute.xlu0 %276
        %vm280 = vcmask 597448
        %281 = vst.msk [vmem:[#allocation2 + $0x5] sm:$0xff] %vm280, %v275
        %282 = vst.msk [vmem:[#allocation2 + $0xd] sm:$0xff] %vm280, %v277
        %s283 = scalar_lea.vmem %s178, 32 [#allocation7]
        %v284 = vld [vmem:[%s283] sm:$0xff]
        %v285 = vld [vmem:[%s283 + $0x8] sm:$0xff]
        %288 = vrot.lane.b32.xlu0 %v284, 57
        %v289 = vpop.permute.xlu0 %288
        %290 = vrot.lane.b32.xlu0 %v285, 57
        %v291 = vpop.permute.xlu0 %290
        %294 = vst.msk [vmem:[#allocation3 + $0x5] sm:$0xff] %vm280, %v289
        %295 = vst.msk [vmem:[#allocation3 + $0xd] sm:$0xff] %vm280, %v291
        %v296 = vld [vmem:[#allocation2] sm:$0xff]
        %v297 = vld [vmem:[#allocation2 + $0x8] sm:$0xff]
        %v298 = vld [vmem:[#allocation2 + $0x10] sm:$0xff]
        %v299 = vld [vmem:[#allocation2 + $0x18] sm:$0x3]
        %v300 = vld [vmem:[#allocation3] sm:$0xff]
        %v301 = vld [vmem:[#allocation3 + $0x8] sm:$0xff]
        %v302 = vld [vmem:[#allocation3 + $0x10] sm:$0xff]
        %v303 = vld [vmem:[#allocation3 + $0x18] sm:$0x3]
        %v304 = vmul.f32 %v296, 0.26601174
        %v305 = vmul.f32 %v297, 0.26601174
        %v306 = vmul.f32 %v298, 0.26601174
        %vm310 = vcmask 1045504
        %v311 = vrot.slane %v297, 2
        %v312 = vrot.slane %v298, 2
        %v313 = vsel %vm310, %v311, %v312
        %v314 = vrot.slane %v299, 2
        %v315 = vsel %vm310, %v312, %v314
        %v318 = vadd.f32 %v296, %v313
        %v319 = vadd.f32 %v297, %v315
        %v320 = vmul.f32 %v318, 0.0010283804
        %v321 = vmul.f32 %v319, 0.0010283804
        %vm324 = vcmask 1044480
        %v325 = vrot.slane %v320, 3
        %v326 = vrot.slane %v321, 3
        %v327 = vsel %vm324, %v325, %v326
        %v331 = vadd.f32 %v304, %v325
        %v332 = vadd.f32 %v305, %v327
        %v333 = vadd.f32 %v306, %v326
        %v334 = vadd.f32 %v296, %v297
        %v335 = vadd.f32 %v297, %v298
        %v336 = vadd.f32 %v298, %v299
        %v337 = vmul.f32 %v334, 0.0075987563
        %v338 = vmul.f32 %v335, 0.0075987563
        %v339 = vmul.f32 %v336, 0.0075987563
        %vm343 = vcmask 1043456
        %v344 = vrot.slane %v337, 4
        %v345 = vrot.slane %v338, 4
        %v346 = vsel %vm343, %v344, %v345
        %v347 = vrot.slane %v339, 4
        %v348 = vsel %vm343, %v345, %v347
        %v352 = vadd.f32 %v331, %v344
        %v353 = vadd.f32 %v332, %v346
        %v354 = vadd.f32 %v333, %v348
        %vm355 = vcmask 1041408
        %v356 = vrot.slane %v297, 6
        %v357 = vrot.slane %v298, 6
        %v358 = vsel %vm355, %v356, %v357
        %v362 = vadd.f32 %v296, %v356
        %v363 = vadd.f32 %v297, %v358
        %v364 = vadd.f32 %v298, %v357
        %v365 = vmul.f32 %v362, 0.036000773
        %v366 = vmul.f32 %v363, 0.036000773
        %v367 = vmul.f32 %v364, 0.036000773
        %vm371 = vcmask 1042432
        %v372 = vrot.slane %v365, 5
        %v373 = vrot.slane %v366, 5
        %v374 = vsel %vm371, %v372, %v373
        %v375 = vrot.slane %v367, 5
        %v376 = vsel %vm371, %v373, %v375
        %v380 = vadd.f32 %v352, %v372
        %v381 = vadd.f32 %v353, %v374
        %v382 = vadd.f32 %v354, %v376
        %v384 = vrot.slane %v296, 4
        %v385 = vrot.slane %v297, 4
        %v386 = vsel %vm343, %v384, %v385
        %v387 = vrot.slane %v298, 4
        %v388 = vsel %vm343, %v385, %v387
        %v392 = vadd.f32 %v296, %v386
        %v393 = vadd.f32 %v297, %v388
        %v394 = vadd.f32 %v298, %v387
        %v395 = vmul.f32 %v392, 0.10936069
        %v396 = vmul.f32 %v393, 0.10936069
        %v397 = vmul.f32 %v394, 0.10936069
        %v401 = vrot.slane %v395, 6
        %v402 = vrot.slane %v396, 6
        %v403 = vsel %vm355, %v401, %v402
        %v404 = vrot.slane %v397, 6
        %v405 = vsel %vm355, %v402, %v404
        %v409 = vadd.f32 %v380, %v401
        %v410 = vadd.f32 %v381, %v403
        %v411 = vadd.f32 %v382, %v405
        %v412 = vrot.slane %v296, 2
        %v413 = vsel %vm310, %v412, %v311
        %v416 = vadd.f32 %v296, %v413
        %v417 = vadd.f32 %v297, %v313
        %v418 = vadd.f32 %v298, %v312
        %v419 = vmul.f32 %v416, 0.21300554
        %v420 = vmul.f32 %v417, 0.21300554
        %v421 = vmul.f32 %v418, 0.21300554
        %vm425 = vcmask 1040384
        %v426 = vrot.slane %v419, 7
        %v427 = vrot.slane %v420, 7
        %v428 = vsel %vm425, %v426, %v427
        %v429 = vrot.slane %v421, 7
        %v430 = vsel %vm425, %v427, %v429
        %v434 = vadd.f32 %v409, %v426
        %v435 = vadd.f32 %v410, %v428
        %v436 = vadd.f32 %v411, %v430
        %v437 = vmul.f32 %v434, 0.26601174
        %v438 = vmul.f32 %v435, 0.26601174
        %v439 = vmul.f32 %v436, 0.26601174
        %443 = vrot.lane.b32.xlu0 %v434, 118
        %v444 = vpop.permute.xlu0 %443
        %445 = vrot.lane.b32.xlu0 %v435, 118
        %v446 = vpop.permute.xlu0 %445
        %447 = vrot.lane.b32.xlu0 %v436, 118
        %v448 = vpop.permute.xlu0 %447
        %v452 = vadd.f32 %v434, %v444
        %v453 = vadd.f32 %v435, %v446
        %v454 = vadd.f32 %v436, %v448
        %v455 = vmul.f32 %v452, 0.0010283804
        %v456 = vmul.f32 %v453, 0.0010283804
        %v457 = vmul.f32 %v454, 0.0010283804
        %461 = vrot.lane.b32.xlu0 %v455, 5
        %v462 = vpop.permute.xlu0 %461
        %463 = vrot.lane.b32.xlu0 %v456, 5
        %v464 = vpop.permute.xlu0 %463
        %465 = vrot.lane.b32.xlu0 %v457, 5
        %v466 = vpop.permute.xlu0 %465
        %v470 = vadd.f32 %v437, %v462
        %v471 = vadd.f32 %v438, %v464
        %v472 = vadd.f32 %v439, %v466
        %473 = vrot.lane.b32.xlu0 %v434, 120
        %v474 = vpop.permute.xlu0 %473
        %475 = vrot.lane.b32.xlu0 %v435, 120
        %v476 = vpop.permute.xlu0 %475
        %477 = vrot.lane.b32.xlu0 %v436, 120
        %v478 = vpop.permute.xlu0 %477
        %v482 = vadd.f32 %v434, %v474
        %v483 = vadd.f32 %v435, %v476
        %v484 = vadd.f32 %v436, %v478
        %v485 = vmul.f32 %v482, 0.0075987563
        %v486 = vmul.f32 %v483, 0.0075987563
        %v487 = vmul.f32 %v484, 0.0075987563
        %491 = vrot.lane.b32.xlu0 %v485, 4
        %v492 = vpop.permute.xlu0 %491
        %493 = vrot.lane.b32.xlu0 %v486, 4
        %v494 = vpop.permute.xlu0 %493
        %495 = vrot.lane.b32.xlu0 %v487, 4
        %v496 = vpop.permute.xlu0 %495
        %v500 = vadd.f32 %v470, %v492
        %v501 = vadd.f32 %v471, %v494
        %v502 = vadd.f32 %v472, %v496
        %503 = vrot.lane.b32.xlu0 %v434, 122
        %v504 = vpop.permute.xlu0 %503
        %505 = vrot.lane.b32.xlu0 %v435, 122
        %v506 = vpop.permute.xlu0 %505
        %507 = vrot.lane.b32.xlu0 %v436, 122
        %v508 = vpop.permute.xlu0 %507
        %v512 = vadd.f32 %v434, %v504
        %v513 = vadd.f32 %v435, %v506
        %v514 = vadd.f32 %v436, %v508
        %v515 = vmul.f32 %v512, 0.036000773
        %v516 = vmul.f32 %v513, 0.036000773
        %v517 = vmul.f32 %v514, 0.036000773
        %521 = vrot.lane.b32.xlu0 %v515, 3
        %v522 = vpop.permute.xlu0 %521
        %523 = vrot.lane.b32.xlu0 %v516, 3
        %v524 = vpop.permute.xlu0 %523
        %525 = vrot.lane.b32.xlu0 %v517, 3
        %v526 = vpop.permute.xlu0 %525
        %v530 = vadd.f32 %v500, %v522
        %v531 = vadd.f32 %v501, %v524
        %v532 = vadd.f32 %v502, %v526
        %533 = vrot.lane.b32.xlu0 %v434, 124
        %v534 = vpop.permute.xlu0 %533
        %535 = vrot.lane.b32.xlu0 %v435, 124
        %v536 = vpop.permute.xlu0 %535
        %537 = vrot.lane.b32.xlu0 %v436, 124
        %v538 = vpop.permute.xlu0 %537
        %v542 = vadd.f32 %v434, %v534
        %v543 = vadd.f32 %v435, %v536
        %v544 = vadd.f32 %v436, %v538
        %v545 = vmul.f32 %v542, 0.10936069
        %v546 = vmul.f32 %v543, 0.10936069
        %v547 = vmul.f32 %v544, 0.10936069
        %551 = vrot.lane.b32.xlu0 %v545, 2
        %v552 = vpop.permute.xlu0 %551
        %553 = vrot.lane.b32.xlu0 %v546, 2
        %v554 = vpop.permute.xlu0 %553
        %555 = vrot.lane.b32.xlu0 %v547, 2
        %v556 = vpop.permute.xlu0 %555
        %v560 = vadd.f32 %v530, %v552
        %v561 = vadd.f32 %v531, %v554
        %v562 = vadd.f32 %v532, %v556
        %563 = vrot.lane.b32.xlu0 %v434, 126
        %v564 = vpop.permute.xlu0 %563
        %565 = vrot.lane.b32.xlu0 %v435, 126
        %v566 = vpop.permute.xlu0 %565
        %567 = vrot.lane.b32.xlu0 %v436, 126
        %v568 = vpop.permute.xlu0 %567
        %v572 = vadd.f32 %v434, %v564
        %v573 = vadd.f32 %v435, %v566
        %v574 = vadd.f32 %v436, %v568
        %v575 = vmul.f32 %v572, 0.21300554
        %v576 = vmul.f32 %v573, 0.21300554
        %v577 = vmul.f32 %v574, 0.21300554
        %581 = vrot.lane.b32.xlu0 %v575, 1
        %v582 = vpop.permute.xlu0 %581
        %583 = vrot.lane.b32.xlu0 %v576, 1
        %v584 = vpop.permute.xlu0 %583
        %585 = vrot.lane.b32.xlu0 %v577, 1
        %v586 = vpop.permute.xlu0 %585
        %v590 = vadd.f32 %v560, %v582
        %v591 = vadd.f32 %v561, %v584
        %v592 = vadd.f32 %v562, %v586
        %v593 = vmul.f32 %v300, 0.26601174
        %v594 = vmul.f32 %v301, 0.26601174
        %v595 = vmul.f32 %v302, 0.26601174
        %v599 = vrot.slane %v301, 2
        %v600 = vrot.slane %v302, 2
        %v601 = vsel %vm310, %v599, %v600
        %v602 = vrot.slane %v303, 2
        %v603 = vsel %vm310, %v600, %v602
        %v606 = vadd.f32 %v300, %v601
        %v607 = vadd.f32 %v301, %v603
        %v608 = vmul.f32 %v606, 0.0010283804
        %v609 = vmul.f32 %v607, 0.0010283804
        %v612 = vrot.slane %v608, 3
        %v613 = vrot.slane %v609, 3
        %v614 = vsel %vm324, %v612, %v613
        %v618 = vadd.f32 %v593, %v612
        %v619 = vadd.f32 %v594, %v614
        %v620 = vadd.f32 %v595, %v613
        %v621 = vadd.f32 %v300, %v301
        %v622 = vadd.f32 %v301, %v302
        %v623 = vadd.f32 %v302, %v303
        %v624 = vmul.f32 %v621, 0.0075987563
        %v625 = vmul.f32 %v622, 0.0075987563
        %v626 = vmul.f32 %v623, 0.0075987563
        %v630 = vrot.slane %v624, 4
        %v631 = vrot.slane %v625, 4
        %v632 = vsel %vm343, %v630, %v631
        %v633 = vrot.slane %v626, 4
        %v634 = vsel %vm343, %v631, %v633
        %v638 = vadd.f32 %v618, %v630
        %v639 = vadd.f32 %v619, %v632
        %v640 = vadd.f32 %v620, %v634
        %v641 = vrot.slane %v301, 6
        %v642 = vrot.slane %v302, 6
        %v643 = vsel %vm355, %v641, %v642
        %v647 = vadd.f32 %v300, %v641
        %v648 = vadd.f32 %v301, %v643
        %v649 = vadd.f32 %v302, %v642
        %v650 = vmul.f32 %v647, 0.036000773
        %v651 = vmul.f32 %v648, 0.036000773
        %v652 = vmul.f32 %v649, 0.036000773
        %v656 = vrot.slane %v650, 5
        %v657 = vrot.slane %v651, 5
        %v658 = vsel %vm371, %v656, %v657
        %v659 = vrot.slane %v652, 5
        %v660 = vsel %vm371, %v657, %v659
        %v664 = vadd.f32 %v638, %v656
        %v665 = vadd.f32 %v639, %v658
        %v666 = vadd.f32 %v640, %v660
        %v668 = vrot.slane %v300, 4
        %v669 = vrot.slane %v301, 4
        %v670 = vsel %vm343, %v668, %v669
        %v671 = vrot.slane %v302, 4
        %v672 = vsel %vm343, %v669, %v671
        %v676 = vadd.f32 %v300, %v670
        %v677 = vadd.f32 %v301, %v672
        %v678 = vadd.f32 %v302, %v671
        %v679 = vmul.f32 %v676, 0.10936069
        %v680 = vmul.f32 %v677, 0.10936069
        %v681 = vmul.f32 %v678, 0.10936069
        %v685 = vrot.slane %v679, 6
        %v686 = vrot.slane %v680, 6
        %v687 = vsel %vm355, %v685, %v686
        %v688 = vrot.slane %v681, 6
        %v689 = vsel %vm355, %v686, %v688
        %v693 = vadd.f32 %v664, %v685
        %v694 = vadd.f32 %v665, %v687
        %v695 = vadd.f32 %v666, %v689
        %v696 = vrot.slane %v300, 2
        %v697 = vsel %vm310, %v696, %v599
        %v700 = vadd.f32 %v300, %v697
        %v701 = vadd.f32 %v301, %v601
        %v702 = vadd.f32 %v302, %v600
        %v703 = vmul.f32 %v700, 0.21300554
        %v704 = vmul.f32 %v701, 0.21300554
        %v705 = vmul.f32 %v702, 0.21300554
        %v709 = vrot.slane %v703, 7
        %v710 = vrot.slane %v704, 7
        %v711 = vsel %vm425, %v709, %v710
        %v712 = vrot.slane %v705, 7
        %v713 = vsel %vm425, %v710, %v712
        %v717 = vadd.f32 %v693, %v709
        %v718 = vadd.f32 %v694, %v711
        %v719 = vadd.f32 %v695, %v713
        %v720 = vmul.f32 %v717, 0.26601174
        %v721 = vmul.f32 %v718, 0.26601174
        %v722 = vmul.f32 %v719, 0.26601174
        %726 = vrot.lane.b32.xlu0 %v717, 118
        %v727 = vpop.permute.xlu0 %726
        %728 = vrot.lane.b32.xlu0 %v718, 118
        %v729 = vpop.permute.xlu0 %728
        %730 = vrot.lane.b32.xlu0 %v719, 118
        %v731 = vpop.permute.xlu0 %730
        %v735 = vadd.f32 %v717, %v727
        %v736 = vadd.f32 %v718, %v729
        %v737 = vadd.f32 %v719, %v731
        %v738 = vmul.f32 %v735, 0.0010283804
        %v739 = vmul.f32 %v736, 0.0010283804
        %v740 = vmul.f32 %v737, 0.0010283804
        %744 = vrot.lane.b32.xlu0 %v738, 5
        %v745 = vpop.permute.xlu0 %744
        %746 = vrot.lane.b32.xlu0 %v739, 5
        %v747 = vpop.permute.xlu0 %746
        %748 = vrot.lane.b32.xlu0 %v740, 5
        %v749 = vpop.permute.xlu0 %748
        %v753 = vadd.f32 %v720, %v745
        %v754 = vadd.f32 %v721, %v747
        %v755 = vadd.f32 %v722, %v749
        %756 = vrot.lane.b32.xlu0 %v717, 120
        %v757 = vpop.permute.xlu0 %756
        %758 = vrot.lane.b32.xlu0 %v718, 120
        %v759 = vpop.permute.xlu0 %758
        %760 = vrot.lane.b32.xlu0 %v719, 120
        %v761 = vpop.permute.xlu0 %760
        %v765 = vadd.f32 %v717, %v757
        %v766 = vadd.f32 %v718, %v759
        %v767 = vadd.f32 %v719, %v761
        %v768 = vmul.f32 %v765, 0.0075987563
        %v769 = vmul.f32 %v766, 0.0075987563
        %v770 = vmul.f32 %v767, 0.0075987563
        %774 = vrot.lane.b32.xlu0 %v768, 4
        %v775 = vpop.permute.xlu0 %774
        %776 = vrot.lane.b32.xlu0 %v769, 4
        %v777 = vpop.permute.xlu0 %776
        %778 = vrot.lane.b32.xlu0 %v770, 4
        %v779 = vpop.permute.xlu0 %778
        %v783 = vadd.f32 %v753, %v775
        %v784 = vadd.f32 %v754, %v777
        %v785 = vadd.f32 %v755, %v779
        %786 = vrot.lane.b32.xlu0 %v717, 122
        %v787 = vpop.permute.xlu0 %786
        %788 = vrot.lane.b32.xlu0 %v718, 122
        %v789 = vpop.permute.xlu0 %788
        %790 = vrot.lane.b32.xlu0 %v719, 122
        %v791 = vpop.permute.xlu0 %790
        %v795 = vadd.f32 %v717, %v787
        %v796 = vadd.f32 %v718, %v789
        %v797 = vadd.f32 %v719, %v791
        %v798 = vmul.f32 %v795, 0.036000773
        %v799 = vmul.f32 %v796, 0.036000773
        %v800 = vmul.f32 %v797, 0.036000773
        %804 = vrot.lane.b32.xlu0 %v798, 3
        %v805 = vpop.permute.xlu0 %804
        %806 = vrot.lane.b32.xlu0 %v799, 3
        %v807 = vpop.permute.xlu0 %806
        %808 = vrot.lane.b32.xlu0 %v800, 3
        %v809 = vpop.permute.xlu0 %808
        %v813 = vadd.f32 %v783, %v805
        %v814 = vadd.f32 %v784, %v807
        %v815 = vadd.f32 %v785, %v809
        %816 = vrot.lane.b32.xlu0 %v717, 124
        %v817 = vpop.permute.xlu0 %816
        %818 = vrot.lane.b32.xlu0 %v718, 124
        %v819 = vpop.permute.xlu0 %818
        %820 = vrot.lane.b32.xlu0 %v719, 124
        %v821 = vpop.permute.xlu0 %820
        %v825 = vadd.f32 %v717, %v817
        %v826 = vadd.f32 %v718, %v819
        %v827 = vadd.f32 %v719, %v821
        %v828 = vmul.f32 %v825, 0.10936069
        %v829 = vmul.f32 %v826, 0.10936069
        %v830 = vmul.f32 %v827, 0.10936069
        %834 = vrot.lane.b32.xlu0 %v828, 2
        %v835 = vpop.permute.xlu0 %834
        %836 = vrot.lane.b32.xlu0 %v829, 2
        %v837 = vpop.permute.xlu0 %836
        %838 = vrot.lane.b32.xlu0 %v830, 2
        %v839 = vpop.permute.xlu0 %838
        %v843 = vadd.f32 %v813, %v835
        %v844 = vadd.f32 %v814, %v837
        %v845 = vadd.f32 %v815, %v839
        %846 = vrot.lane.b32.xlu0 %v717, 126
        %v847 = vpop.permute.xlu0 %846
        %848 = vrot.lane.b32.xlu0 %v718, 126
        %v849 = vpop.permute.xlu0 %848
        %850 = vrot.lane.b32.xlu0 %v719, 126
        %v851 = vpop.permute.xlu0 %850
        %v855 = vadd.f32 %v717, %v847
        %v856 = vadd.f32 %v718, %v849
        %v857 = vadd.f32 %v719, %v851
        %v858 = vmul.f32 %v855, 0.21300554
        %v859 = vmul.f32 %v856, 0.21300554
        %v860 = vmul.f32 %v857, 0.21300554
        %864 = vrot.lane.b32.xlu0 %v858, 1
        %v865 = vpop.permute.xlu0 %864
        %866 = vrot.lane.b32.xlu0 %v859, 1
        %v867 = vpop.permute.xlu0 %866
        %868 = vrot.lane.b32.xlu0 %v860, 1
        %v869 = vpop.permute.xlu0 %868
        %v873 = vadd.f32 %v843, %v865
        %v874 = vadd.f32 %v844, %v867
        %v875 = vadd.f32 %v845, %v869
        %v876 = vmul.f32 %v296, %v296
        %v877 = vmul.f32 %v297, %v297
        %v878 = vmul.f32 %v298, %v298
        %v879 = vmul.f32 %v299, %v299
        %v880 = vmul.f32 %v876, 0.26601174
        %v881 = vmul.f32 %v877, 0.26601174
        %v882 = vmul.f32 %v878, 0.26601174
        %v886 = vrot.slane %v877, 2
        %v887 = vrot.slane %v878, 2
        %v888 = vsel %vm310, %v886, %v887
        %v889 = vrot.slane %v879, 2
        %v890 = vsel %vm310, %v887, %v889
        %v893 = vadd.f32 %v876, %v888
        %v894 = vadd.f32 %v877, %v890
        %v895 = vmul.f32 %v893, 0.0010283804
        %v896 = vmul.f32 %v894, 0.0010283804
        %v899 = vrot.slane %v895, 3
        %v900 = vrot.slane %v896, 3
        %v901 = vsel %vm324, %v899, %v900
        %v905 = vadd.f32 %v880, %v899
        %v906 = vadd.f32 %v881, %v901
        %v907 = vadd.f32 %v882, %v900
        %v908 = vadd.f32 %v876, %v877
        %v909 = vadd.f32 %v877, %v878
        %v910 = vadd.f32 %v878, %v879
        %v911 = vmul.f32 %v908, 0.0075987563
        %v912 = vmul.f32 %v909, 0.0075987563
        %v913 = vmul.f32 %v910, 0.0075987563
        %v917 = vrot.slane %v911, 4
        %v918 = vrot.slane %v912, 4
        %v919 = vsel %vm343, %v917, %v918
        %v920 = vrot.slane %v913, 4
        %v921 = vsel %vm343, %v918, %v920
        %v925 = vadd.f32 %v905, %v917
        %v926 = vadd.f32 %v906, %v919
        %v927 = vadd.f32 %v907, %v921
        %v928 = vrot.slane %v877, 6
        %v929 = vrot.slane %v878, 6
        %v930 = vsel %vm355, %v928, %v929
        %v934 = vadd.f32 %v876, %v928
        %v935 = vadd.f32 %v877, %v930
        %v936 = vadd.f32 %v878, %v929
        %v937 = vmul.f32 %v934, 0.036000773
        %v938 = vmul.f32 %v935, 0.036000773
        %v939 = vmul.f32 %v936, 0.036000773
        %v943 = vrot.slane %v937, 5
        %v944 = vrot.slane %v938, 5
        %v945 = vsel %vm371, %v943, %v944
        %v946 = vrot.slane %v939, 5
        %v947 = vsel %vm371, %v944, %v946
        %v951 = vadd.f32 %v925, %v943
        %v952 = vadd.f32 %v926, %v945
        %v953 = vadd.f32 %v927, %v947
        %v955 = vrot.slane %v876, 4
        %v956 = vrot.slane %v877, 4
        %v957 = vsel %vm343, %v955, %v956
        %v958 = vrot.slane %v878, 4
        %v959 = vsel %vm343, %v956, %v958
        %v963 = vadd.f32 %v876, %v957
        %v964 = vadd.f32 %v877, %v959
        %v965 = vadd.f32 %v878, %v958
        %v966 = vmul.f32 %v963, 0.10936069
        %v967 = vmul.f32 %v964, 0.10936069
        %v968 = vmul.f32 %v965, 0.10936069
        %v972 = vrot.slane %v966, 6
        %v973 = vrot.slane %v967, 6
        %v974 = vsel %vm355, %v972, %v973
        %v975 = vrot.slane %v968, 6
        %v976 = vsel %vm355, %v973, %v975
        %v980 = vadd.f32 %v951, %v972
        %v981 = vadd.f32 %v952, %v974
        %v982 = vadd.f32 %v953, %v976
        %v983 = vrot.slane %v876, 2
        %v984 = vsel %vm310, %v983, %v886
        %v987 = vadd.f32 %v876, %v984
        %v988 = vadd.f32 %v877, %v888
        %v989 = vadd.f32 %v878, %v887
        %v990 = vmul.f32 %v987, 0.21300554
        %v991 = vmul.f32 %v988, 0.21300554
        %v992 = vmul.f32 %v989, 0.21300554
        %v996 = vrot.slane %v990, 7
        %v997 = vrot.slane %v991, 7
        %v998 = vsel %vm425, %v996, %v997
        %v999 = vrot.slane %v992, 7
        %v1000 = vsel %vm425, %v997, %v999
        %v1004 = vadd.f32 %v980, %v996
        %v1005 = vadd.f32 %v981, %v998
        %v1006 = vadd.f32 %v982, %v1000
        %v1007 = vmul.f32 %v1004, 0.26601174
        %v1008 = vmul.f32 %v1005, 0.26601174
        %v1009 = vmul.f32 %v1006, 0.26601174
        %1013 = vrot.lane.b32.xlu0 %v1004, 118
        %v1014 = vpop.permute.xlu0 %1013
        %1015 = vrot.lane.b32.xlu0 %v1005, 118
        %v1016 = vpop.permute.xlu0 %1015
        %1017 = vrot.lane.b32.xlu0 %v1006, 118
        %v1018 = vpop.permute.xlu0 %1017
        %v1022 = vadd.f32 %v1004, %v1014
        %v1023 = vadd.f32 %v1005, %v1016
        %v1024 = vadd.f32 %v1006, %v1018
        %v1025 = vmul.f32 %v1022, 0.0010283804
        %v1026 = vmul.f32 %v1023, 0.0010283804
        %v1027 = vmul.f32 %v1024, 0.0010283804
        %1031 = vrot.lane.b32.xlu0 %v1025, 5
        %v1032 = vpop.permute.xlu0 %1031
        %1033 = vrot.lane.b32.xlu0 %v1026, 5
        %v1034 = vpop.permute.xlu0 %1033
        %1035 = vrot.lane.b32.xlu0 %v1027, 5
        %v1036 = vpop.permute.xlu0 %1035
        %v1040 = vadd.f32 %v1007, %v1032
        %v1041 = vadd.f32 %v1008, %v1034
        %v1042 = vadd.f32 %v1009, %v1036
        %1043 = vrot.lane.b32.xlu0 %v1004, 120
        %v1044 = vpop.permute.xlu0 %1043
        %1045 = vrot.lane.b32.xlu0 %v1005, 120
        %v1046 = vpop.permute.xlu0 %1045
        %1047 = vrot.lane.b32.xlu0 %v1006, 120
        %v1048 = vpop.permute.xlu0 %1047
        %v1052 = vadd.f32 %v1004, %v1044
        %v1053 = vadd.f32 %v1005, %v1046
        %v1054 = vadd.f32 %v1006, %v1048
        %v1055 = vmul.f32 %v1052, 0.0075987563
        %v1056 = vmul.f32 %v1053, 0.0075987563
        %v1057 = vmul.f32 %v1054, 0.0075987563
        %1061 = vrot.lane.b32.xlu0 %v1055, 4
        %v1062 = vpop.permute.xlu0 %1061
        %1063 = vrot.lane.b32.xlu0 %v1056, 4
        %v1064 = vpop.permute.xlu0 %1063
        %1065 = vrot.lane.b32.xlu0 %v1057, 4
        %v1066 = vpop.permute.xlu0 %1065
        %v1070 = vadd.f32 %v1040, %v1062
        %v1071 = vadd.f32 %v1041, %v1064
        %v1072 = vadd.f32 %v1042, %v1066
        %1073 = vrot.lane.b32.xlu0 %v1004, 122
        %v1074 = vpop.permute.xlu0 %1073
        %1075 = vrot.lane.b32.xlu0 %v1005, 122
        %v1076 = vpop.permute.xlu0 %1075
        %1077 = vrot.lane.b32.xlu0 %v1006, 122
        %v1078 = vpop.permute.xlu0 %1077
        %v1082 = vadd.f32 %v1004, %v1074
        %v1083 = vadd.f32 %v1005, %v1076
        %v1084 = vadd.f32 %v1006, %v1078
        %v1085 = vmul.f32 %v1082, 0.036000773
        %v1086 = vmul.f32 %v1083, 0.036000773
        %v1087 = vmul.f32 %v1084, 0.036000773
        %1091 = vrot.lane.b32.xlu0 %v1085, 3
        %v1092 = vpop.permute.xlu0 %1091
        %1093 = vrot.lane.b32.xlu0 %v1086, 3
        %v1094 = vpop.permute.xlu0 %1093
        %1095 = vrot.lane.b32.xlu0 %v1087, 3
        %v1096 = vpop.permute.xlu0 %1095
        %v1100 = vadd.f32 %v1070, %v1092
        %v1101 = vadd.f32 %v1071, %v1094
        %v1102 = vadd.f32 %v1072, %v1096
        %1103 = vrot.lane.b32.xlu0 %v1004, 124
        %v1104 = vpop.permute.xlu0 %1103
        %1105 = vrot.lane.b32.xlu0 %v1005, 124
        %v1106 = vpop.permute.xlu0 %1105
        %1107 = vrot.lane.b32.xlu0 %v1006, 124
        %v1108 = vpop.permute.xlu0 %1107
        %v1112 = vadd.f32 %v1004, %v1104
        %v1113 = vadd.f32 %v1005, %v1106
        %v1114 = vadd.f32 %v1006, %v1108
        %v1115 = vmul.f32 %v1112, 0.10936069
        %v1116 = vmul.f32 %v1113, 0.10936069
        %v1117 = vmul.f32 %v1114, 0.10936069
        %1121 = vrot.lane.b32.xlu0 %v1115, 2
        %v1122 = vpop.permute.xlu0 %1121
        %1123 = vrot.lane.b32.xlu0 %v1116, 2
        %v1124 = vpop.permute.xlu0 %1123
        %1125 = vrot.lane.b32.xlu0 %v1117, 2
        %v1126 = vpop.permute.xlu0 %1125
        %v1130 = vadd.f32 %v1100, %v1122
        %v1131 = vadd.f32 %v1101, %v1124
        %v1132 = vadd.f32 %v1102, %v1126
        %1133 = vrot.lane.b32.xlu0 %v1004, 126
        %v1134 = vpop.permute.xlu0 %1133
        %1135 = vrot.lane.b32.xlu0 %v1005, 126
        %v1136 = vpop.permute.xlu0 %1135
        %1137 = vrot.lane.b32.xlu0 %v1006, 126
        %v1138 = vpop.permute.xlu0 %1137
        %v1142 = vadd.f32 %v1004, %v1134
        %v1143 = vadd.f32 %v1005, %v1136
        %v1144 = vadd.f32 %v1006, %v1138
        %v1145 = vmul.f32 %v1142, 0.21300554
        %v1146 = vmul.f32 %v1143, 0.21300554
        %v1147 = vmul.f32 %v1144, 0.21300554
        %1151 = vrot.lane.b32.xlu0 %v1145, 1
        %v1152 = vpop.permute.xlu0 %1151
        %1153 = vrot.lane.b32.xlu0 %v1146, 1
        %v1154 = vpop.permute.xlu0 %1153
        %1155 = vrot.lane.b32.xlu0 %v1147, 1
        %v1156 = vpop.permute.xlu0 %1155
        %v1160 = vadd.f32 %v1130, %v1152
        %v1161 = vadd.f32 %v1131, %v1154
        %v1162 = vadd.f32 %v1132, %v1156
        %v1163 = vmul.f32 %v300, %v300
        %v1164 = vmul.f32 %v301, %v301
        %v1165 = vmul.f32 %v302, %v302
        %v1166 = vmul.f32 %v303, %v303
        %v1167 = vmul.f32 %v1163, 0.26601174
        %v1168 = vmul.f32 %v1164, 0.26601174
        %v1169 = vmul.f32 %v1165, 0.26601174
        %v1173 = vrot.slane %v1164, 2
        %v1174 = vrot.slane %v1165, 2
        %v1175 = vsel %vm310, %v1173, %v1174
        %v1176 = vrot.slane %v1166, 2
        %v1177 = vsel %vm310, %v1174, %v1176
        %v1180 = vadd.f32 %v1163, %v1175
        %v1181 = vadd.f32 %v1164, %v1177
        %v1182 = vmul.f32 %v1180, 0.0010283804
        %v1183 = vmul.f32 %v1181, 0.0010283804
        %v1186 = vrot.slane %v1182, 3
        %v1187 = vrot.slane %v1183, 3
        %v1188 = vsel %vm324, %v1186, %v1187
        %v1192 = vadd.f32 %v1167, %v1186
        %v1193 = vadd.f32 %v1168, %v1188
        %v1194 = vadd.f32 %v1169, %v1187
        %v1195 = vadd.f32 %v1163, %v1164
        %v1196 = vadd.f32 %v1164, %v1165
        %v1197 = vadd.f32 %v1165, %v1166
        %v1198 = vmul.f32 %v1195, 0.0075987563
        %v1199 = vmul.f32 %v1196, 0.0075987563
        %v1200 = vmul.f32 %v1197, 0.0075987563
        %v1204 = vrot.slane %v1198, 4
        %v1205 = vrot.slane %v1199, 4
        %v1206 = vsel %vm343, %v1204, %v1205
        %v1207 = vrot.slane %v1200, 4
        %v1208 = vsel %vm343, %v1205, %v1207
        %v1212 = vadd.f32 %v1192, %v1204
        %v1213 = vadd.f32 %v1193, %v1206
        %v1214 = vadd.f32 %v1194, %v1208
        %v1215 = vrot.slane %v1164, 6
        %v1216 = vrot.slane %v1165, 6
        %v1217 = vsel %vm355, %v1215, %v1216
        %v1221 = vadd.f32 %v1163, %v1215
        %v1222 = vadd.f32 %v1164, %v1217
        %v1223 = vadd.f32 %v1165, %v1216
        %v1224 = vmul.f32 %v1221, 0.036000773
        %v1225 = vmul.f32 %v1222, 0.036000773
        %v1226 = vmul.f32 %v1223, 0.036000773
        %v1230 = vrot.slane %v1224, 5
        %v1231 = vrot.slane %v1225, 5
        %v1232 = vsel %vm371, %v1230, %v1231
        %v1233 = vrot.slane %v1226, 5
        %v1234 = vsel %vm371, %v1231, %v1233
        %v1238 = vadd.f32 %v1212, %v1230
        %v1239 = vadd.f32 %v1213, %v1232
        %v1240 = vadd.f32 %v1214, %v1234
        %v1242 = vrot.slane %v1163, 4
        %v1243 = vrot.slane %v1164, 4
        %v1244 = vsel %vm343, %v1242, %v1243
        %v1245 = vrot.slane %v1165, 4
        %v1246 = vsel %vm343, %v1243, %v1245
        %v1250 = vadd.f32 %v1163, %v1244
        %v1251 = vadd.f32 %v1164, %v1246
        %v1252 = vadd.f32 %v1165, %v1245
        %v1253 = vmul.f32 %v1250, 0.10936069
        %v1254 = vmul.f32 %v1251, 0.10936069
        %v1255 = vmul.f32 %v1252, 0.10936069
        %v1259 = vrot.slane %v1253, 6
        %v1260 = vrot.slane %v1254, 6
        %v1261 = vsel %vm355, %v1259, %v1260
        %v1262 = vrot.slane %v1255, 6
        %v1263 = vsel %vm355, %v1260, %v1262
        %v1267 = vadd.f32 %v1238, %v1259
        %v1268 = vadd.f32 %v1239, %v1261
        %v1269 = vadd.f32 %v1240, %v1263
        %v1270 = vrot.slane %v1163, 2
        %v1271 = vsel %vm310, %v1270, %v1173
        %v1274 = vadd.f32 %v1163, %v1271
        %v1275 = vadd.f32 %v1164, %v1175
        %v1276 = vadd.f32 %v1165, %v1174
        %v1277 = vmul.f32 %v1274, 0.21300554
        %v1278 = vmul.f32 %v1275, 0.21300554
        %v1279 = vmul.f32 %v1276, 0.21300554
        %v1283 = vrot.slane %v1277, 7
        %v1284 = vrot.slane %v1278, 7
        %v1285 = vsel %vm425, %v1283, %v1284
        %v1286 = vrot.slane %v1279, 7
        %v1287 = vsel %vm425, %v1284, %v1286
        %v1291 = vadd.f32 %v1267, %v1283
        %v1292 = vadd.f32 %v1268, %v1285
        %v1293 = vadd.f32 %v1269, %v1287
        %v1294 = vmul.f32 %v1291, 0.26601174
        %v1295 = vmul.f32 %v1292, 0.26601174
        %v1296 = vmul.f32 %v1293, 0.26601174
        %1300 = vrot.lane.b32.xlu0 %v1291, 118
        %v1301 = vpop.permute.xlu0 %1300
        %1302 = vrot.lane.b32.xlu0 %v1292, 118
        %v1303 = vpop.permute.xlu0 %1302
        %1304 = vrot.lane.b32.xlu0 %v1293, 118
        %v1305 = vpop.permute.xlu0 %1304
        %v1309 = vadd.f32 %v1291, %v1301
        %v1310 = vadd.f32 %v1292, %v1303
        %v1311 = vadd.f32 %v1293, %v1305
        %v1312 = vmul.f32 %v1309, 0.0010283804
        %v1313 = vmul.f32 %v1310, 0.0010283804
        %v1314 = vmul.f32 %v1311, 0.0010283804
        %1318 = vrot.lane.b32.xlu0 %v1312, 5
        %v1319 = vpop.permute.xlu0 %1318
        %1320 = vrot.lane.b32.xlu0 %v1313, 5
        %v1321 = vpop.permute.xlu0 %1320
        %1322 = vrot.lane.b32.xlu0 %v1314, 5
        %v1323 = vpop.permute.xlu0 %1322
        %v1327 = vadd.f32 %v1294, %v1319
        %v1328 = vadd.f32 %v1295, %v1321
        %v1329 = vadd.f32 %v1296, %v1323
        %1330 = vrot.lane.b32.xlu0 %v1291, 120
        %v1331 = vpop.permute.xlu0 %1330
        %1332 = vrot.lane.b32.xlu0 %v1292, 120
        %v1333 = vpop.permute.xlu0 %1332
        %1334 = vrot.lane.b32.xlu0 %v1293, 120
        %v1335 = vpop.permute.xlu0 %1334
        %v1339 = vadd.f32 %v1291, %v1331
        %v1340 = vadd.f32 %v1292, %v1333
        %v1341 = vadd.f32 %v1293, %v1335
        %v1342 = vmul.f32 %v1339, 0.0075987563
        %v1343 = vmul.f32 %v1340, 0.0075987563
        %v1344 = vmul.f32 %v1341, 0.0075987563
        %1348 = vrot.lane.b32.xlu0 %v1342, 4
        %v1349 = vpop.permute.xlu0 %1348
        %1350 = vrot.lane.b32.xlu0 %v1343, 4
        %v1351 = vpop.permute.xlu0 %1350
        %1352 = vrot.lane.b32.xlu0 %v1344, 4
        %v1353 = vpop.permute.xlu0 %1352
        %v1357 = vadd.f32 %v1327, %v1349
        %v1358 = vadd.f32 %v1328, %v1351
        %v1359 = vadd.f32 %v1329, %v1353
        %1360 = vrot.lane.b32.xlu0 %v1291, 122
        %v1361 = vpop.permute.xlu0 %1360
        %1362 = vrot.lane.b32.xlu0 %v1292, 122
        %v1363 = vpop.permute.xlu0 %1362
        %1364 = vrot.lane.b32.xlu0 %v1293, 122
        %v1365 = vpop.permute.xlu0 %1364
        %v1369 = vadd.f32 %v1291, %v1361
        %v1370 = vadd.f32 %v1292, %v1363
        %v1371 = vadd.f32 %v1293, %v1365
        %v1372 = vmul.f32 %v1369, 0.036000773
        %v1373 = vmul.f32 %v1370, 0.036000773
        %v1374 = vmul.f32 %v1371, 0.036000773
        %1378 = vrot.lane.b32.xlu0 %v1372, 3
        %v1379 = vpop.permute.xlu0 %1378
        %1380 = vrot.lane.b32.xlu0 %v1373, 3
        %v1381 = vpop.permute.xlu0 %1380
        %1382 = vrot.lane.b32.xlu0 %v1374, 3
        %v1383 = vpop.permute.xlu0 %1382
        %v1387 = vadd.f32 %v1357, %v1379
        %v1388 = vadd.f32 %v1358, %v1381
        %v1389 = vadd.f32 %v1359, %v1383
        %1390 = vrot.lane.b32.xlu0 %v1291, 124
        %v1391 = vpop.permute.xlu0 %1390
        %1392 = vrot.lane.b32.xlu0 %v1292, 124
        %v1393 = vpop.permute.xlu0 %1392
        %1394 = vrot.lane.b32.xlu0 %v1293, 124
        %v1395 = vpop.permute.xlu0 %1394
        %v1399 = vadd.f32 %v1291, %v1391
        %v1400 = vadd.f32 %v1292, %v1393
        %v1401 = vadd.f32 %v1293, %v1395
        %v1402 = vmul.f32 %v1399, 0.10936069
        %v1403 = vmul.f32 %v1400, 0.10936069
        %v1404 = vmul.f32 %v1401, 0.10936069
        %1408 = vrot.lane.b32.xlu0 %v1402, 2
        %v1409 = vpop.permute.xlu0 %1408
        %1410 = vrot.lane.b32.xlu0 %v1403, 2
        %v1411 = vpop.permute.xlu0 %1410
        %1412 = vrot.lane.b32.xlu0 %v1404, 2
        %v1413 = vpop.permute.xlu0 %1412
        %v1417 = vadd.f32 %v1387, %v1409
        %v1418 = vadd.f32 %v1388, %v1411
        %v1419 = vadd.f32 %v1389, %v1413
        %1420 = vrot.lane.b32.xlu0 %v1291, 126
        %v1421 = vpop.permute.xlu0 %1420
        %1422 = vrot.lane.b32.xlu0 %v1292, 126
        %v1423 = vpop.permute.xlu0 %1422
        %1424 = vrot.lane.b32.xlu0 %v1293, 126
        %v1425 = vpop.permute.xlu0 %1424
        %v1429 = vadd.f32 %v1291, %v1421
        %v1430 = vadd.f32 %v1292, %v1423
        %v1431 = vadd.f32 %v1293, %v1425
        %v1432 = vmul.f32 %v1429, 0.21300554
        %v1433 = vmul.f32 %v1430, 0.21300554
        %v1434 = vmul.f32 %v1431, 0.21300554
        %1438 = vrot.lane.b32.xlu0 %v1432, 1
        %v1439 = vpop.permute.xlu0 %1438
        %1440 = vrot.lane.b32.xlu0 %v1433, 1
        %v1441 = vpop.permute.xlu0 %1440
        %1442 = vrot.lane.b32.xlu0 %v1434, 1
        %v1443 = vpop.permute.xlu0 %1442
        %v1447 = vadd.f32 %v1417, %v1439
        %v1448 = vadd.f32 %v1418, %v1441
        %v1449 = vadd.f32 %v1419, %v1443
        %v1450 = vmul.f32 %v296, %v300
        %v1451 = vmul.f32 %v297, %v301
        %v1452 = vmul.f32 %v298, %v302
        %v1453 = vmul.f32 %v299, %v303
        %v1454 = vmul.f32 %v1450, 0.26601174
        %v1455 = vmul.f32 %v1451, 0.26601174
        %v1456 = vmul.f32 %v1452, 0.26601174
        %v1460 = vrot.slane %v1451, 2
        %v1461 = vrot.slane %v1452, 2
        %v1462 = vsel %vm310, %v1460, %v1461
        %v1463 = vrot.slane %v1453, 2
        %v1464 = vsel %vm310, %v1461, %v1463
        %v1467 = vadd.f32 %v1450, %v1462
        %v1468 = vadd.f32 %v1451, %v1464
        %v1469 = vmul.f32 %v1467, 0.0010283804
        %v1470 = vmul.f32 %v1468, 0.0010283804
        %v1473 = vrot.slane %v1469, 3
        %v1474 = vrot.slane %v1470, 3
        %v1475 = vsel %vm324, %v1473, %v1474
        %v1479 = vadd.f32 %v1454, %v1473
        %v1480 = vadd.f32 %v1455, %v1475
        %v1481 = vadd.f32 %v1456, %v1474
        %v1482 = vadd.f32 %v1450, %v1451
        %v1483 = vadd.f32 %v1451, %v1452
        %v1484 = vadd.f32 %v1452, %v1453
        %v1485 = vmul.f32 %v1482, 0.0075987563
        %v1486 = vmul.f32 %v1483, 0.0075987563
        %v1487 = vmul.f32 %v1484, 0.0075987563
        %v1491 = vrot.slane %v1485, 4
        %v1492 = vrot.slane %v1486, 4
        %v1493 = vsel %vm343, %v1491, %v1492
        %v1494 = vrot.slane %v1487, 4
        %v1495 = vsel %vm343, %v1492, %v1494
        %v1499 = vadd.f32 %v1479, %v1491
        %v1500 = vadd.f32 %v1480, %v1493
        %v1501 = vadd.f32 %v1481, %v1495
        %v1502 = vrot.slane %v1451, 6
        %v1503 = vrot.slane %v1452, 6
        %v1504 = vsel %vm355, %v1502, %v1503
        %v1508 = vadd.f32 %v1450, %v1502
        %v1509 = vadd.f32 %v1451, %v1504
        %v1510 = vadd.f32 %v1452, %v1503
        %v1511 = vmul.f32 %v1508, 0.036000773
        %v1512 = vmul.f32 %v1509, 0.036000773
        %v1513 = vmul.f32 %v1510, 0.036000773
        %v1517 = vrot.slane %v1511, 5
        %v1518 = vrot.slane %v1512, 5
        %v1519 = vsel %vm371, %v1517, %v1518
        %v1520 = vrot.slane %v1513, 5
        %v1521 = vsel %vm371, %v1518, %v1520
        %v1525 = vadd.f32 %v1499, %v1517
        %v1526 = vadd.f32 %v1500, %v1519
        %v1527 = vadd.f32 %v1501, %v1521
        %v1529 = vrot.slane %v1450, 4
        %v1530 = vrot.slane %v1451, 4
        %v1531 = vsel %vm343, %v1529, %v1530
        %v1532 = vrot.slane %v1452, 4
        %v1533 = vsel %vm343, %v1530, %v1532
        %v1537 = vadd.f32 %v1450, %v1531
        %v1538 = vadd.f32 %v1451, %v1533
        %v1539 = vadd.f32 %v1452, %v1532
        %v1540 = vmul.f32 %v1537, 0.10936069
        %v1541 = vmul.f32 %v1538, 0.10936069
        %v1542 = vmul.f32 %v1539, 0.10936069
        %v1546 = vrot.slane %v1540, 6
        %v1547 = vrot.slane %v1541, 6
        %v1548 = vsel %vm355, %v1546, %v1547
        %v1549 = vrot.slane %v1542, 6
        %v1550 = vsel %vm355, %v1547, %v1549
        %v1554 = vadd.f32 %v1525, %v1546
        %v1555 = vadd.f32 %v1526, %v1548
        %v1556 = vadd.f32 %v1527, %v1550
        %v1557 = vrot.slane %v1450, 2
        %v1558 = vsel %vm310, %v1557, %v1460
        %v1561 = vadd.f32 %v1450, %v1558
        %v1562 = vadd.f32 %v1451, %v1462
        %v1563 = vadd.f32 %v1452, %v1461
        %v1564 = vmul.f32 %v1561, 0.21300554
        %v1565 = vmul.f32 %v1562, 0.21300554
        %v1566 = vmul.f32 %v1563, 0.21300554
        %v1570 = vrot.slane %v1564, 7
        %v1571 = vrot.slane %v1565, 7
        %v1572 = vsel %vm425, %v1570, %v1571
        %v1573 = vrot.slane %v1566, 7
        %v1574 = vsel %vm425, %v1571, %v1573
        %v1578 = vadd.f32 %v1554, %v1570
        %v1579 = vadd.f32 %v1555, %v1572
        %v1580 = vadd.f32 %v1556, %v1574
        %v1581 = vmul.f32 %v1578, 0.26601174
        %v1582 = vmul.f32 %v1579, 0.26601174
        %v1583 = vmul.f32 %v1580, 0.26601174
        %1587 = vrot.lane.b32.xlu0 %v1578, 118
        %v1588 = vpop.permute.xlu0 %1587
        %1589 = vrot.lane.b32.xlu0 %v1579, 118
        %v1590 = vpop.permute.xlu0 %1589
        %1591 = vrot.lane.b32.xlu0 %v1580, 118
        %v1592 = vpop.permute.xlu0 %1591
        %v1596 = vadd.f32 %v1578, %v1588
        %v1597 = vadd.f32 %v1579, %v1590
        %v1598 = vadd.f32 %v1580, %v1592
        %v1599 = vmul.f32 %v1596, 0.0010283804
        %v1600 = vmul.f32 %v1597, 0.0010283804
        %v1601 = vmul.f32 %v1598, 0.0010283804
        %1605 = vrot.lane.b32.xlu0 %v1599, 5
        %v1606 = vpop.permute.xlu0 %1605
        %1607 = vrot.lane.b32.xlu0 %v1600, 5
        %v1608 = vpop.permute.xlu0 %1607
        %1609 = vrot.lane.b32.xlu0 %v1601, 5
        %v1610 = vpop.permute.xlu0 %1609
        %v1614 = vadd.f32 %v1581, %v1606
        %v1615 = vadd.f32 %v1582, %v1608
        %v1616 = vadd.f32 %v1583, %v1610
        %1617 = vrot.lane.b32.xlu0 %v1578, 120
        %v1618 = vpop.permute.xlu0 %1617
        %1619 = vrot.lane.b32.xlu0 %v1579, 120
        %v1620 = vpop.permute.xlu0 %1619
        %1621 = vrot.lane.b32.xlu0 %v1580, 120
        %v1622 = vpop.permute.xlu0 %1621
        %v1626 = vadd.f32 %v1578, %v1618
        %v1627 = vadd.f32 %v1579, %v1620
        %v1628 = vadd.f32 %v1580, %v1622
        %v1629 = vmul.f32 %v1626, 0.0075987563
        %v1630 = vmul.f32 %v1627, 0.0075987563
        %v1631 = vmul.f32 %v1628, 0.0075987563
        %1635 = vrot.lane.b32.xlu0 %v1629, 4
        %v1636 = vpop.permute.xlu0 %1635
        %1637 = vrot.lane.b32.xlu0 %v1630, 4
        %v1638 = vpop.permute.xlu0 %1637
        %1639 = vrot.lane.b32.xlu0 %v1631, 4
        %v1640 = vpop.permute.xlu0 %1639
        %v1644 = vadd.f32 %v1614, %v1636
        %v1645 = vadd.f32 %v1615, %v1638
        %v1646 = vadd.f32 %v1616, %v1640
        %1647 = vrot.lane.b32.xlu0 %v1578, 122
        %v1648 = vpop.permute.xlu0 %1647
        %1649 = vrot.lane.b32.xlu0 %v1579, 122
        %v1650 = vpop.permute.xlu0 %1649
        %1651 = vrot.lane.b32.xlu0 %v1580, 122
        %v1652 = vpop.permute.xlu0 %1651
        %v1656 = vadd.f32 %v1578, %v1648
        %v1657 = vadd.f32 %v1579, %v1650
        %v1658 = vadd.f32 %v1580, %v1652
        %v1659 = vmul.f32 %v1656, 0.036000773
        %v1660 = vmul.f32 %v1657, 0.036000773
        %v1661 = vmul.f32 %v1658, 0.036000773
        %1665 = vrot.lane.b32.xlu0 %v1659, 3
        %v1666 = vpop.permute.xlu0 %1665
        %1667 = vrot.lane.b32.xlu0 %v1660, 3
        %v1668 = vpop.permute.xlu0 %1667
        %1669 = vrot.lane.b32.xlu0 %v1661, 3
        %v1670 = vpop.permute.xlu0 %1669
        %v1674 = vadd.f32 %v1644, %v1666
        %v1675 = vadd.f32 %v1645, %v1668
        %v1676 = vadd.f32 %v1646, %v1670
        %1677 = vrot.lane.b32.xlu0 %v1578, 124
        %v1678 = vpop.permute.xlu0 %1677
        %1679 = vrot.lane.b32.xlu0 %v1579, 124
        %v1680 = vpop.permute.xlu0 %1679
        %1681 = vrot.lane.b32.xlu0 %v1580, 124
        %v1682 = vpop.permute.xlu0 %1681
        %v1686 = vadd.f32 %v1578, %v1678
        %v1687 = vadd.f32 %v1579, %v1680
        %v1688 = vadd.f32 %v1580, %v1682
        %v1689 = vmul.f32 %v1686, 0.10936069
        %v1690 = vmul.f32 %v1687, 0.10936069
        %v1691 = vmul.f32 %v1688, 0.10936069
        %1695 = vrot.lane.b32.xlu0 %v1689, 2
        %v1696 = vpop.permute.xlu0 %1695
        %1697 = vrot.lane.b32.xlu0 %v1690, 2
        %v1698 = vpop.permute.xlu0 %1697
        %1699 = vrot.lane.b32.xlu0 %v1691, 2
        %v1700 = vpop.permute.xlu0 %1699
        %v1704 = vadd.f32 %v1674, %v1696
        %v1705 = vadd.f32 %v1675, %v1698
        %v1706 = vadd.f32 %v1676, %v1700
        %1707 = vrot.lane.b32.xlu0 %v1578, 126
        %v1708 = vpop.permute.xlu0 %1707
        %1709 = vrot.lane.b32.xlu0 %v1579, 126
        %v1710 = vpop.permute.xlu0 %1709
        %1711 = vrot.lane.b32.xlu0 %v1580, 126
        %v1712 = vpop.permute.xlu0 %1711
        %v1716 = vadd.f32 %v1578, %v1708
        %v1717 = vadd.f32 %v1579, %v1710
        %v1718 = vadd.f32 %v1580, %v1712
        %v1719 = vmul.f32 %v1716, 0.21300554
        %v1720 = vmul.f32 %v1717, 0.21300554
        %v1721 = vmul.f32 %v1718, 0.21300554
        %1725 = vrot.lane.b32.xlu0 %v1719, 1
        %v1726 = vpop.permute.xlu0 %1725
        %1727 = vrot.lane.b32.xlu0 %v1720, 1
        %v1728 = vpop.permute.xlu0 %1727
        %1729 = vrot.lane.b32.xlu0 %v1721, 1
        %v1730 = vpop.permute.xlu0 %1729
        %v1734 = vadd.f32 %v1704, %v1726
        %v1735 = vadd.f32 %v1705, %v1728
        %v1736 = vadd.f32 %v1706, %v1730
        %v1737 = vmul.f32 %v590, %v590
        %v1738 = vmul.f32 %v591, %v591
        %v1739 = vmul.f32 %v592, %v592
        %v1740 = vmul.f32 %v873, %v873
        %v1741 = vmul.f32 %v874, %v874
        %v1742 = vmul.f32 %v875, %v875
        %v1743 = vsub.f32 %v1160, %v1737
        %v1744 = vsub.f32 %v1161, %v1738
        %v1745 = vsub.f32 %v1162, %v1739
        %v1746 = vsub.f32 %v1447, %v1740
        %v1747 = vsub.f32 %v1448, %v1741
        %v1748 = vsub.f32 %v1449, %v1742
        %v1749 = vmul.f32 %v590, %v873
        %v1750 = vmul.f32 %v591, %v874
        %v1751 = vmul.f32 %v592, %v875
        %v1752 = vsub.f32 %v1734, %v1749
        %v1753 = vsub.f32 %v1735, %v1750
        %v1754 = vsub.f32 %v1736, %v1751
        %v1755 = vmul.f32 %v590, 2.0
        %v1756 = vmul.f32 %v591, 2.0
        %v1757 = vmul.f32 %v592, 2.0
        %v1758 = vmul.f32 %v1755, %v873
        %v1759 = vmul.f32 %v1756, %v874
        %v1760 = vmul.f32 %v1757, %v875
        %v1761 = vadd.f32 %v1758, 0.0001
        %v1762 = vadd.f32 %v1759, 0.0001
        %v1763 = vadd.f32 %v1760, 0.0001
        %v1764 = vmul.f32 %v1752, 2.0
        %v1765 = vmul.f32 %v1753, 2.0
        %v1766 = vmul.f32 %v1754, 2.0
        %v1767 = vadd.f32 %v1764, 0.0009
        %v1768 = vadd.f32 %v1765, 0.0009
        %v1769 = vadd.f32 %v1766, 0.0009
        %v1770 = vmul.f32 %v1761, %v1767
        %v1771 = vmul.f32 %v1762, %v1768
        %v1772 = vmul.f32 %v1763, %v1769
        %v1773 = vadd.f32 %v1737, %v1740
        %v1774 = vadd.f32 %v1738, %v1741
        %v1775 = vadd.f32 %v1739, %v1742
        %v1776 = vadd.f32 %v1773, 0.0001
        %v1777 = vadd.f32 %v1774, 0.0001
        %v1778 = vadd.f32 %v1775, 0.0001
        %v1779 = vadd.f32 %v1743, %v1746
        %v1780 = vadd.f32 %v1744, %v1747
        %v1781 = vadd.f32 %v1745, %v1748
        %v1782 = vadd.f32 %v1779, 0.0009
        %v1783 = vadd.f32 %v1780, 0.0009
        %v1784 = vadd.f32 %v1781, 0.0009
        %v1785 = vmul.f32 %v1776, %v1782
        %v1786 = vmul.f32 %v1777, %v1783
        %v1787 = vmul.f32 %v1778, %v1784
        %v1788 = vadd.f32 %v1785, 1e-12
        %v1789 = vadd.f32 %v1786, 1e-12
        %v1790 = vadd.f32 %v1787, 1e-12
        %v1791 = vrcp.pop %v1788
        %v1792 = vrcp.pop %v1789
        %v1793 = vrcp.pop %v1790
        %v1794 = vmul.f32 %v1770, %v1791
        %v1795 = vmul.f32 %v1771, %v1792
        %v1796 = vmul.f32 %v1772, %v1793
        %1800 = vrot.lane.b32.xlu0 %v1794, 123
        %v1801 = vpop.permute.xlu0 %1800
        %1802 = vrot.lane.b32.xlu0 %v1795, 123
        %v1803 = vpop.permute.xlu0 %1802
        %1804 = vrot.lane.b32.xlu0 %v1796, 123
        %v1805 = vpop.permute.xlu0 %1804
        %vm1809 = vcmask 130053
        %1810 = vst.msk [vmem:[%s203 - $0x5] sm:$0xe0] %vm1809, %v1801
        %vm1811 = vcmask 130048
        %1812 = vst.msk [vmem:[%s203 + $0x3] sm:$0xff] %vm1811, %v1803
        %vm1813 = vcmask 126976
        %1814 = vst.msk [vmem:[%s203 + $0xb] sm:$0x1f] %vm1813, %v1805
        %1815 = vrot.lane.b32.xlu0 %v1794, 97
        %v1816 = vpop.permute.xlu0 %1815
        %1817 = vrot.lane.b32.xlu0 %v1795, 97
        %v1818 = vpop.permute.xlu0 %1817
        %1819 = vrot.lane.b32.xlu0 %v1796, 97
        %v1820 = vpop.permute.xlu0 %1819
        %s1824 = scalar_lea.vmem %s203, 16 [#allocation9]
        %1825 = vst.msk [vmem:[%s1824 - $0x5] sm:$0xe0] %vm1809, %v1816
        %1826 = vst.msk [vmem:[%s1824 + $0x3] sm:$0xff] %vm1811, %v1818
        %1827 = vst.msk [vmem:[%s1824 + $0xb] sm:$0x1f] %vm1813, %v1820
        %1828 = vrot.lane.b32.xlu0 %v1794, 71
        %v1829 = vpop.permute.xlu0 %1828
        %1830 = vrot.lane.b32.xlu0 %v1795, 71
        %v1831 = vpop.permute.xlu0 %1830
        %1832 = vrot.lane.b32.xlu0 %v1796, 71
        %v1833 = vpop.permute.xlu0 %1832
        %s1837 = scalar_lea.vmem %s203, 32 [#allocation9]
        %1838 = vst.msk [vmem:[%s1837 - $0x5] sm:$0xe0] %vm1809, %v1829
        %1839 = vst.msk [vmem:[%s1837 + $0x3] sm:$0xff] %vm1811, %v1831
        %1840 = vst.msk [vmem:[%s1837 + $0xb] sm:$0x1f] %vm1813, %v1833
        %s1841 = sand.u32 %s82, 1
        %s1842 = scalar_lea.sflag [#allocation6], %s1841
        %s1843 = sand.u32 %s82, 1
        %s1844 = smul.addr %s1843, 48
        %s1845 = scalar_lea.vmem [#allocation9], %s1844
        // Predicated region
        $region37: #{ssim_map_pallas.1} parent=27 // pred_check
          %p1846 = pneg %p92
        $region38: #{ssim_map_pallas.1} parent=27 // pred_check_branch
          %1848 = sbr.rel (%p1846) target = $region40
        $region39: #{ssim_map_pallas.1} parent=27 // pred_region
          %s1849 = smul.u32 3, %s22
          %s1851 = ssub.s32 768, 768
          %1852 = vsyncadd %s1842, %s1851
          %s1853 = smul.addr %s1849, 2
          %s1854 = smul.addr %s1853, 128
          %s1855 = scalar_lea.hbm %s2, %s1854
          %s1856 = sshll.u32 %s1845, 4
          %s1857 = int_to_ptr.vmem [resolvable:$true] %s1856
          %1862 = dma.vmem_to_hbm [thread:$0]  %s1857, 768, %s1855, %s1842, 128, 128, 8
        $region40: #{ssim_map_pallas.1} parent=27 // pred_fallthru
          _
      $region28: #{ssim_map_pallas.1} parent=5 // pred_fallthru
        _
      %p1863 = scmp.le.s32.totalorder 2, %s17
      // Predicated region
      $region41: #{ssim_map_pallas.1} parent=5 // pred_check
        %p1864 = pneg %p1863
      $region42: #{ssim_map_pallas.1} parent=5 // pred_check_branch
        %1866 = sbr.rel (%p1864) target = $region44
      $region43: #{ssim_map_pallas.1} parent=5 // pred_region
        %s1867 = ssub.s32 %s17, 2
        // Predicated region
        $region45: #{ssim_map_pallas.1} parent=43 // pred_check
          %p1868 = pneg %p98
        $region46: #{ssim_map_pallas.1} parent=43 // pred_check_branch
          %1870 = sbr.rel (%p1868) target = $region48
        $region47: #{ssim_map_pallas.1} parent=43 // pred_region
          %s1871 = sand.u32 %s83, 1
          %s1872 = scalar_lea.sflag [#allocation6], %s1871
          %s1873 = sand.u32 %s83, 1
          %s1874 = smul.addr %s1873, 48
          %s1875 = scalar_lea.vmem [#allocation9], %s1874
          %1876 = dma.done %s1872, 768
        $region48: #{ssim_map_pallas.1} parent=43 // pred_fallthru
          _
      $region44: #{ssim_map_pallas.1} parent=5 // pred_fallthru
        _
    $region6: #{ssim_map_pallas.1} parent=1 // loop_footer
      %s21 = sadd.s32 1, %s17
    $region7: #{ssim_map_pallas.1} parent=1 // loop_footer_branch
      %16 = sbr.rel target = $region3
    $region8: #{ssim_map_pallas.1} parent=1 // loop_exit
      _
    %1877 = vsyncpa [#allocation5], 1
    %s1878 = scalar_lea.sflag [#allocation5], 1
    %1879 = vsyncpa %s1878, 1
    %1880 = vsyncpa [#allocation8], 1
    %s1881 = scalar_lea.sflag [#allocation8], 1
    %1882 = vsyncpa %s1881, 1
    %1883 = vsyncpa [#allocation6], 1
    %s1884 = scalar_lea.sflag [#allocation6], 1
    %1885 = vsyncpa %s1884, 1

</llo_original>
